<compile_context>
chip_gen: v7x
topology: tpu7x:2x2x1
jax: 0.10.0
libtpu: 0.0.40
codegen_flags: <defaults>
</compile_context>

<pallas_src>
import functools

import jax
import jax.numpy as jnp
from jax import lax
from jax.experimental import pallas as pl
from jax.experimental.pallas import tpu as pltpu


def _round_up(n, m):
    return ((n + m - 1) // m) * m


def _attention_kernel(x_ref, wqkv_ref, o_ref, *, bt, p8, pv, c, matmul_dtype):
    # wqkv_ref: (QKV_ROWS, C_EXT), grid-resident, already in matmul_dtype.
    w = wqkv_ref[...]
    approx_recip = matmul_dtype == jnp.bfloat16

    def body(t, carry):
        # x block row layout (sublanes): [x (C rows) | ones row | zero pad];
        # pixels on lanes -> lane-dense loads/stores, no transposes anywhere.
        xT_ext = x_ref[t]                                          # (C_EXT, HW) f32
        xm = xT_ext.astype(matmul_dtype)

        # Fused q/k/v projection with the bias folded in as an extra K row
        # (ones row of x times the bias column of Wqkv): one MXU matmul.
        qkv = jnp.dot(w, xm, preferred_element_type=jnp.float32)   # (QKV_ROWS, HW)

        qT = qkv[0:p8, :]                                          # (P8, HW)
        kT = qkv[p8:2 * p8, :]                                     # (P8, HW)
        # v block padded with a constant-one row at sublane-aligned offset PV:
        # the PV matmul then produces the softmax denominator as an extra MXU
        # output row (no (HW,HW) cross-vreg reduction on VPU/XLU).
        vT_ext = qkv[2 * p8:2 * p8 + pv + 8, :].astype(matmul_dtype)  # (PV+8, HW)

        # Transposed scores: sT[j, i] = sum_c k[c, j] q[c, i] == attention[i, j].
        sT = lax.dot_general(
            kT.astype(matmul_dtype), qT.astype(matmul_dtype),
            dimension_numbers=(((0,), (0,)), ((), ())),
            preferred_element_type=jnp.float32)                    # (HW_j, HW_i)

        # Numerically-stable softmax over j (axis 0); exp in matmul_dtype so the
        # (HW,HW) prob matrix is half-width in bf16 mode and feeds the MXU.
        m = jnp.max(sT, axis=0, keepdims=True)                     # (1, HW_i) f32
        pT = jnp.exp((sT - m).astype(matmul_dtype))                # (HW_j, HW_i)

        # out[c, i] = (sum_j v[c, j] p[j, i]) / (sum_j p[j, i]) + x[c, i]
        acc = jnp.dot(vT_ext, pT, preferred_element_type=jnp.float32)  # (PV+8, HW)
        denom = acc[pv:pv + 1, :]                                  # (1, HW)
        out = acc[0:c, :] * pl.reciprocal(denom, approx=approx_recip)

        # Residual kept in f32 (x block is f32).
        o_ref[t] = (out + xT_ext[0:c, :]).astype(o_ref.dtype)
        return carry

    lax.fori_loop(0, bt, body, 0, unroll=True)


def attention_module_pallas(x_nchw, w1, b1, w2, b2, w3, b3, *,
                            matmul_dtype=jnp.bfloat16, bt=None):
    """Forward of AttentionModule.

    x_nchw : (B, C, H, W)
    w1, b1 : conv1 weight (C//8, C) and bias (C//8,)   (1x1 conv == channel matmul)
    w2, b2 : conv2 weight (C//8, C) and bias (C//8,)
    w3, b3 : conv3 weight (C, C)    and bias (C,)
    matmul_dtype : MXU operand dtype (bf16 default; f32 for exact validation)
    bt           : images per grid step (auto-picked if None)
    """
    B, C, H, W = x_nchw.shape
    HW = H * W
    if HW % 128 != 0:
        raise ValueError("H*W must be a multiple of 128 (TPU lane width)")
    C8 = w1.shape[0]
    P8 = _round_up(max(C8, 1), 8)       # q/k row blocks padded to sublane multiple
    PV = _round_up(C, 8)                # v row block padded to sublane multiple
    V_EXT = PV + 8                      # + constant-one row (+ pad)
    QKV_ROWS = 2 * P8 + V_EXT
    C_EXT = C + 8                       # x rows + ones row (+ pad) -> folded bias

    if bt is None:
        divisors = [d for d in (8, 4, 2, 1) if B % d == 0]
        bt = next((d for d in divisors if B // d >= 2), divisors[0])
    if B % bt != 0:
        raise ValueError(f"bt={bt} must divide batch size {B}")

    f32 = jnp.float32
    # Packed weight: rows [q | k | v | ones-row | pad], cols [C weights | bias | pad].
    wqkv = jnp.zeros((QKV_ROWS, C_EXT), f32)
    wqkv = wqkv.at[0:C8, 0:C].set(w1.astype(f32))
    wqkv = wqkv.at[0:C8, C].set(b1.astype(f32))
    wqkv = wqkv.at[P8:P8 + C8, 0:C].set(w2.astype(f32))
    wqkv = wqkv.at[P8:P8 + C8, C].set(b2.astype(f32))
    wqkv = wqkv.at[2 * P8:2 * P8 + C, 0:C].set(w3.astype(f32))
    wqkv = wqkv.at[2 * P8:2 * P8 + C, C].set(b3.astype(f32))
    wqkv = wqkv.at[2 * P8 + PV, C].set(1.0)   # constant-one v row -> softmax denom
    wqkv = wqkv.astype(matmul_dtype)          # pre-cast once (grid-resident)

    # NCHW -> (B, C, HW) is a free reshape; append ones row (+ zero pad) for the
    # folded bias / denominator trick.  HW stays the lane (fast) axis.
    x_tok = x_nchw.reshape(B, C, HW).astype(f32)
    pad = jnp.zeros((B, 8, HW), f32).at[:, 0, :].set(1.0)
    x_ext = jnp.concatenate([x_tok, pad], axis=1)             # (B, C_EXT, HW)

    grid_spec = pltpu.PrefetchScalarGridSpec(
        num_scalar_prefetch=0,
        grid=(B // bt,),
        in_specs=[
            pl.BlockSpec((bt, C_EXT, HW), lambda b: (b, 0, 0)),   # x (bt images)
            pl.BlockSpec((QKV_ROWS, C_EXT), lambda b: (0, 0)),    # fused Wqkv
        ],
        out_specs=pl.BlockSpec((bt, C, HW), lambda b: (b, 0, 0)),
    )

    mm_bytes = 2 if matmul_dtype == jnp.bfloat16 else 4
    cost = pl.CostEstimate(
        flops=int(2 * B * (QKV_ROWS * C_EXT * HW + P8 * HW * HW + V_EXT * HW * HW)),
        transcendentals=int(B * HW * HW),
        bytes_accessed=int(4 * B * (C_EXT + C) * HW
                           + mm_bytes * QKV_ROWS * C_EXT
                           + B * HW * HW * (4 + mm_bytes)),       # score + prob
    )

    # Generation-aware VMEM limit: ~3/4 of physical (96 MiB v5e/v6e, 48 MiB v7x).
    try:
        vmem_limit = int(pltpu.get_tpu_info().vmem_capacity_bytes) * 3 // 4
    except Exception:
        vmem_limit = 48 * 1024 * 1024

    kernel = functools.partial(_attention_kernel, bt=bt, p8=P8, pv=PV, c=C,
                               matmul_dtype=matmul_dtype)

    out_tok = pl.pallas_call(
        kernel,
        out_shape=jax.ShapeDtypeStruct((B, C, HW), x_nchw.dtype),
        grid_spec=grid_spec,
        compiler_params=pltpu.CompilerParams(
            dimension_semantics=("parallel",),
            vmem_limit_bytes=vmem_limit),
        cost_estimate=cost,
    )(x_ext, wqkv)

    return out_tok.reshape(B, C, H, W)


def attention_module_ref(x_nchw, w1, b1, w2, b2, w3, b3):
    """Pure-JAX reference matching the PyTorch forward exactly."""
    B, C, H, W = x_nchw.shape
    HW = H * W
    xf = x_nchw.reshape(B, C, HW)
    q = jnp.einsum('oc,bci->boi', w1, xf) + b1[None, :, None]   # (B, C8, HW)
    k = jnp.einsum('oc,bci->boi', w2, xf) + b2[None, :, None]   # (B, C8, HW)
    v = jnp.einsum('oc,bci->boi', w3, xf) + b3[None, :, None]   # (B, C,  HW)
    att = jnp.einsum('bci,bcj->bij', q, k)                      # (B, HW, HW)
    att = jax.nn.softmax(att, axis=-1)
    out = jnp.einsum('bcj,bij->bci', v, att) + xf               # (B, C, HW)
    return out.reshape(B, C, H, W)


if __name__ == "__main__":
    # Small deterministic example: batch=4, channels=32 (C//8 = 4), 16x16 spatial.
    B, C, H, W = 4, 32, 16, 16
    C8 = C // 8

    key = jax.random.PRNGKey(0)
    kx, k1, k2, k3, kb1, kb2, kb3 = jax.random.split(key, 7)

    x = jax.random.normal(kx, (B, C, H, W), dtype=jnp.float32)

    # 1x1 conv parameters in conv layout: weight (C_out, C_in), bias (C_out,).
    w1 = jax.random.normal(k1, (C8, C), dtype=jnp.float32) * 0.1
    w2 = jax.random.normal(k2, (C8, C), dtype=jnp.float32) * 0.1
    w3 = jax.random.normal(k3, (C, C), dtype=jnp.float32) * 0.1
    b1 = jax.random.normal(kb1, (C8,), dtype=jnp.float32) * 0.1
    b2 = jax.random.normal(kb2, (C8,), dtype=jnp.float32) * 0.1
    b3 = jax.random.normal(kb3, (C,), dtype=jnp.float32) * 0.1

    ref = attention_module_ref(x, w1, b1, w2, b2, w3, b3)

    # Exact-mode check (f32 MXU operands): matches the reference tightly.
    out_f32 = attention_module_pallas(x, w1, b1, w2, b2, w3, b3,
                                      matmul_dtype=jnp.float32)
    out_f32 = jax.block_until_ready(out_f32)
    assert out_f32.shape == (B, C, H, W)
    assert jnp.allclose(out_f32, ref, atol=1e-4, rtol=1e-4), "f32 mismatch vs reference"

    # Default performance mode (bf16 MXU operands / bf16 exp, f32 accumulation).
    out = attention_module_pallas(x, w1, b1, w2, b2, w3, b3)
    out = jax.block_until_ready(out)
    assert out.shape == (B, C, H, W)
    assert jnp.allclose(out, ref, atol=5e-2, rtol=5e-2), "bf16 mismatch vs reference"

    print("KERNEL_OK")
</pallas_src>

<mosaic_0001>
module attributes {stable_mosaic.version = 11 : i64} {
  func.func @_attention_kernel(%arg0: i32, %arg1: memref<2x40x256xf32, #tpu.memory_space<vmem>>, %arg2: memref<56x40xf32, #tpu.memory_space<vmem>>, %arg3: memref<2x32x256xf32, #tpu.memory_space<vmem>>) attributes {dimension_semantics = [#tpu.dimension_semantics<parallel>], iteration_bounds = array<i64: 2>, scalar_prefetch = 0 : i64, scratch_operands = 0 : i64, tpu.core_type = #tpu.core_type<tc>, window_params = [{transform_indices = @transform_0, window_bounds = array<i64: 2, 40, 256>}, {pipeline_mode = #tpu.pipeline_mode<synchronous>, transform_indices = @transform_1, window_bounds = array<i64: 56, 40>}, {transform_indices = @transform_2, window_bounds = array<i64: 2, 32, 256>}]} {
    %c0 = arith.constant 0 : index
    %c0_0 = arith.constant 0 : index
    %0 = vector.load %arg2[%c0, %c0_0] : memref<56x40xf32, #tpu.memory_space<vmem>>, vector<56x40xf32>
    %c0_i32 = arith.constant 0 : i32
    %1 = arith.index_cast %c0_i32 : i32 to index
    %c0_1 = arith.constant 0 : index
    %c0_2 = arith.constant 0 : index
    %2 = vector.load %arg1[%1, %c0_1, %c0_2] : memref<2x40x256xf32, #tpu.memory_space<vmem>>, vector<1x40x256xf32>
    %3 = vector.shape_cast %2 : vector<1x40x256xf32> to vector<40x256xf32>
    %cst = arith.constant dense<0.000000e+00> : vector<56x256xf32>
    %4 = tpu.matmul %0, %3, %cst {dimension_numbers = #tpu.dot_dimension_numbers<[1], [0], [0], [1], [0, 0, 1, 1], [], []>} : vector<56x40xf32>, vector<40x256xf32>, vector<56x256xf32> -> vector<56x256xf32>
    %5 = vector.extract_strided_slice %4 {offsets = [0, 0], sizes = [8, 256], strides = [1, 1]} : vector<56x256xf32> to vector<8x256xf32>
    %6 = vector.extract_strided_slice %4 {offsets = [8, 0], sizes = [8, 256], strides = [1, 1]} : vector<56x256xf32> to vector<8x256xf32>
    %7 = vector.extract_strided_slice %4 {offsets = [16, 0], sizes = [40, 256], strides = [1, 1]} : vector<56x256xf32> to vector<40x256xf32>
    %cst_3 = arith.constant dense<0.000000e+00> : vector<256x256xf32>
    %8 = tpu.matmul %6, %5, %cst_3 {dimension_numbers = #tpu.dot_dimension_numbers<[0], [0], [1], [1], [0, 1, 1, 1], [], []>} : vector<8x256xf32>, vector<8x256xf32>, vector<256x256xf32> -> vector<256x256xf32>
    %cst_4 = arith.constant dense<0xFF800000> : vector<256xf32>
    %9 = vector.multi_reduction <maximumf>, %8, %cst_4 [0] : vector<256x256xf32> to vector<256xf32>
    %10 = vector.shape_cast %9 : vector<256xf32> to vector<1x256xf32>
    %11 = vector.broadcast %10 : vector<1x256xf32> to vector<256x256xf32>
    %12 = arith.subf %8, %11 : vector<256x256xf32>
    %13 = math.exp %12 : vector<256x256xf32>
    %cst_5 = arith.constant dense<0.000000e+00> : vector<40x256xf32>
    %14 = tpu.matmul %7, %13, %cst_5 {dimension_numbers = #tpu.dot_dimension_numbers<[1], [0], [0], [1], [0, 0, 1, 1], [], []>} : vector<40x256xf32>, vector<256x256xf32>, vector<40x256xf32> -> vector<40x256xf32>
    %15 = vector.extract_strided_slice %14 {offsets = [32, 0], sizes = [1, 256], strides = [1, 1]} : vector<40x256xf32> to vector<1x256xf32>
    %16 = vector.extract_strided_slice %14 {offsets = [0, 0], sizes = [32, 256], strides = [1, 1]} : vector<40x256xf32> to vector<32x256xf32>
    %17 = tpu.reciprocal %15 : vector<1x256xf32> -> vector<1x256xf32>
    %18 = vector.broadcast %17 : vector<1x256xf32> to vector<32x256xf32>
    %19 = arith.mulf %16, %18 : vector<32x256xf32>
    %20 = vector.extract_strided_slice %3 {offsets = [0, 0], sizes = [32, 256], strides = [1, 1]} : vector<40x256xf32> to vector<32x256xf32>
    %21 = arith.addf %19, %20 : vector<32x256xf32>
    %22 = arith.index_cast %c0_i32 : i32 to index
    %c0_6 = arith.constant 0 : index
    %c0_7 = arith.constant 0 : index
    %23 = vector.load %arg3[%22, %c0_6, %c0_7] : memref<2x32x256xf32, #tpu.memory_space<vmem>>, vector<1x32x256xf32>
    %24 = vector.shape_cast %23 : vector<1x32x256xf32> to vector<32x256xf32>
    %25 = vector.shape_cast %21 : vector<32x256xf32> to vector<1x32x256xf32>
    tpu.vector_store %arg3[%22, %c0_6, %c0_7], %25 {strides = array<i32>} : memref<2x32x256xf32, #tpu.memory_space<vmem>>, vector<1x32x256xf32>,
    %c1_i32 = arith.constant 1 : i32
    %26 = arith.index_cast %c1_i32 : i32 to index
    %c0_8 = arith.constant 0 : index
    %c0_9 = arith.constant 0 : index
    %27 = vector.load %arg1[%26, %c0_8, %c0_9] : memref<2x40x256xf32, #tpu.memory_space<vmem>>, vector<1x40x256xf32>
    %28 = vector.shape_cast %27 : vector<1x40x256xf32> to vector<40x256xf32>
    %cst_10 = arith.constant dense<0.000000e+00> : vector<56x256xf32>
    %29 = tpu.matmul %0, %28, %cst_10 {dimension_numbers = #tpu.dot_dimension_numbers<[1], [0], [0], [1], [0, 0, 1, 1], [], []>} : vector<56x40xf32>, vector<40x256xf32>, vector<56x256xf32> -> vector<56x256xf32>
    %30 = vector.extract_strided_slice %29 {offsets = [0, 0], sizes = [8, 256], strides = [1, 1]} : vector<56x256xf32> to vector<8x256xf32>
    %31 = vector.extract_strided_slice %29 {offsets = [8, 0], sizes = [8, 256], strides = [1, 1]} : vector<56x256xf32> to vector<8x256xf32>
    %32 = vector.extract_strided_slice %29 {offsets = [16, 0], sizes = [40, 256], strides = [1, 1]} : vector<56x256xf32> to vector<40x256xf32>
    %cst_11 = arith.constant dense<0.000000e+00> : vector<256x256xf32>
    %33 = tpu.matmul %31, %30, %cst_11 {dimension_numbers = #tpu.dot_dimension_numbers<[0], [0], [1], [1], [0, 1, 1, 1], [], []>} : vector<8x256xf32>, vector<8x256xf32>, vector<256x256xf32> -> vector<256x256xf32>
    %cst_12 = arith.constant dense<0xFF800000> : vector<256xf32>
    %34 = vector.multi_reduction <maximumf>, %33, %cst_12 [0] : vector<256x256xf32> to vector<256xf32>
    %35 = vector.shape_cast %34 : vector<256xf32> to vector<1x256xf32>
    %36 = vector.broadcast %35 : vector<1x256xf32> to vector<256x256xf32>
    %37 = arith.subf %33, %36 : vector<256x256xf32>
    %38 = math.exp %37 : vector<256x256xf32>
    %cst_13 = arith.constant dense<0.000000e+00> : vector<40x256xf32>
    %39 = tpu.matmul %32, %38, %cst_13 {dimension_numbers = #tpu.dot_dimension_numbers<[1], [0], [0], [1], [0, 0, 1, 1], [], []>} : vector<40x256xf32>, vector<256x256xf32>, vector<40x256xf32> -> vector<40x256xf32>
    %40 = vector.extract_strided_slice %39 {offsets = [32, 0], sizes = [1, 256], strides = [1, 1]} : vector<40x256xf32> to vector<1x256xf32>
    %41 = vector.extract_strided_slice %39 {offsets = [0, 0], sizes = [32, 256], strides = [1, 1]} : vector<40x256xf32> to vector<32x256xf32>
    %42 = tpu.reciprocal %40 : vector<1x256xf32> -> vector<1x256xf32>
    %43 = vector.broadcast %42 : vector<1x256xf32> to vector<32x256xf32>
    %44 = arith.mulf %41, %43 : vector<32x256xf32>
    %45 = vector.extract_strided_slice %28 {offsets = [0, 0], sizes = [32, 256], strides = [1, 1]} : vector<40x256xf32> to vector<32x256xf32>
    %46 = arith.addf %44, %45 : vector<32x256xf32>
    %47 = arith.index_cast %c1_i32 : i32 to index
    %c0_14 = arith.constant 0 : index
    %c0_15 = arith.constant 0 : index
    %48 = vector.load %arg3[%47, %c0_14, %c0_15] : memref<2x32x256xf32, #tpu.memory_space<vmem>>, vector<1x32x256xf32>
    %49 = vector.shape_cast %48 : vector<1x32x256xf32> to vector<32x256xf32>
    %50 = vector.shape_cast %46 : vector<32x256xf32> to vector<1x32x256xf32>
    tpu.vector_store %arg3[%47, %c0_14, %c0_15], %50 {strides = array<i32>} : memref<2x32x256xf32, #tpu.memory_space<vmem>>, vector<1x32x256xf32>,
    %c2_i32 = arith.constant 2 : i32
    return
  }
  func.func @transform_0(%arg0: i32) -> (i32, i32, i32) {
    %c0_i32 = arith.constant 0 : i32
    %c0_i32_0 = arith.constant 0 : i32
    %c0_i32_1 = arith.constant 0 : i32
    return %arg0, %c0_i32, %c0_i32_0 : i32, i32, i32
  }
  func.func @transform_1(%arg0: i32) -> (i32, i32) {
    %c0_i32 = arith.constant 0 : i32
    %c0_i32_0 = arith.constant 0 : i32
    %c0_i32_1 = arith.constant 0 : i32
    return %c0_i32, %c0_i32_0 : i32, i32
  }
  func.func @transform_2(%arg0: i32) -> (i32, i32, i32) {
    %c0_i32 = arith.constant 0 : i32
    %c0_i32_0 = arith.constant 0 : i32
    %c0_i32_1 = arith.constant 0 : i32
    return %arg0, %c0_i32, %c0_i32_0 : i32, i32, i32
  }
}

</mosaic_0001>

<llo_original>
// kernel: tpu_custom_call.1
$region0: #{tpu_custom_call.1}
  #allocation0 [shape = 'u32[]', space=smem, size = 0x4, offset = 0x4, fixed_abs, tag = 'smem constant byte address 0x4 - core index']
  #allocation1 [shape = 'u32[144,128]{1,0:T(1,128)}', space=vmem, size = 0x12000, scoped, tag = 'internal scratch']
  %s0 = inlined_call_operand.hbm [shape: f32[4,40,256], index: 0, kind: input, shape index: {}]
  %s1 = inlined_call_operand.vmem [shape: f32[56,40], index: 1, kind: input, shape index: {}]
  %s2 = inlined_call_operand.hbm [shape: f32[4,32,256], index: 2, kind: output, shape index: {}]
  %s3 = sld [smem:[#allocation0]]
  $region45: #{tpu_custom_call.1} parent=0
    _
  %s5 = ssub.s32 1, %s3
  %s6 = scalar_select 0, %s5, %s3
  $region1: #{tpu_custom_call.1} parent=0
    #allocation2 [shape = 'u8[163840]{0}', space=vmem, size = 0x28000, scoped, tag = 'input window, operand 0']
    #allocation3 [shape = 's32[2]{0}', space=sflag, size = 0x8, scoped, tag = 'scoped memory for tpu_custom_call.1']
    #allocation4 [shape = 's32[2]{0}', space=sflag, size = 0x8, scoped, tag = 'scoped memory for tpu_custom_call.1']
    #allocation5 [shape = 'u8[131072]{0}', space=vmem, size = 0x20000, scoped, tag = 'output window, operand 0']
    %7 = vsyncpa [#allocation3], 0
    %s8 = scalar_lea.sflag [#allocation3], 1
    %9 = vsyncpa %s8, 0
    %10 = vsyncpa [#allocation4], 0
    %s11 = scalar_lea.sflag [#allocation4], 1
    %12 = vsyncpa %s11, 0
    loop: start=0, step=1, limit=4
    $region2: #{tpu_custom_call.1} parent=1 // loop_pre_header
      _
    $region3: #{tpu_custom_call.1} parent=1 // loop_header
      %s14 = sphi 0, %s18
      %p15 = scmp.ge.s32.totalorder %s14, 4
      %s24 = sphi 0, %s26
      %s27 = sphi 0, %s24
      %s28 = sphi 0, %s27
      %s44 = sphi 0, %s28
      %s48 = sphi 0, %s48
      %s50 = sphi 0, %s48
      %s51 = sphi 0, %s50
      %s65 = sphi 0, %s51
      %s71 = sphi 0, %s73
      %s74 = sphi 0, %s71
      %s75 = sphi 0, %s74
      %s91 = sphi 0, %s75
    $region4: #{tpu_custom_call.1} parent=1 // loop_header_branch
      %17 = sbr.rel (%p15) target = $region8
    $region5: #{tpu_custom_call.1} parent=1 // loop_body
      %s19 = ssub.s32 %s14, 1
      %s20 = ssub.s32 %s14, 2
      %s21 = sadd.s32 %s14, 1
      %s22 = ssub.s32 %s14, %s21
      %p23 = scmp.eq.s32.totalorder %s22, 0
      %s25 = sadd.s32 %s24, 1
      %s26 = scalar_select %p23, %s24, %s25
      %p29 = pneg %p23
      %p30 = scmp.eq.s32.totalorder %s14, 1
      %p31 = por %p29, %p30
      %p32 = scmp.ne.s32.totalorder %s24, %s27
      %p33 = scmp.eq.s32.totalorder %s14, 0
      %p34 = por %p32, %p33
      %p35 = scmp.ne.s32.totalorder %s24, %s27
      %p36 = scmp.eq.s32.totalorder %s19, 1
      %p37 = por %p35, %p36
      %p38 = scmp.ne.s32.totalorder %s27, %s28
      %p39 = scmp.eq.s32.totalorder %s19, 0
      %p40 = por %p38, %p39
      %p41 = scmp.ne.s32.totalorder %s27, %s28
      %p42 = scmp.eq.s32.totalorder %s20, 1
      %p43 = por %p41, %p42
      %p45 = scmp.ne.s32.totalorder %s28, %s44
      %p46 = scmp.eq.s32.totalorder %s20, 0
      %p47 = por %p45, %p46
      %s49 = sadd.s32 %s48, 1
      %p52 = scmp.eq.s32.totalorder %s14, 1
      %p53 = scmp.ne.s32.totalorder %s48, %s50
      %p54 = scmp.eq.s32.totalorder %s14, 0
      %p55 = por %p53, %p54
      %p56 = scmp.ne.s32.totalorder %s48, %s50
      %p57 = scmp.eq.s32.totalorder %s19, 1
      %p58 = por %p56, %p57
      %p59 = scmp.ne.s32.totalorder %s50, %s51
      %p60 = scmp.eq.s32.totalorder %s19, 0
      %p61 = por %p59, %p60
      %p62 = scmp.ne.s32.totalorder %s50, %s51
      %p63 = scmp.eq.s32.totalorder %s20, 1
      %p64 = por %p62, %p63
      %p66 = scmp.ne.s32.totalorder %s51, %s65
      %p67 = scmp.eq.s32.totalorder %s20, 0
      %p68 = por %p66, %p67
      %s69 = ssub.s32 %s14, %s21
      %p70 = scmp.eq.s32.totalorder %s69, 0
      %s72 = sadd.s32 %s71, 1
      %s73 = scalar_select %p70, %s71, %s72
      %p76 = pneg %p70
      %p77 = scmp.eq.s32.totalorder %s14, 1
      %p78 = por %p76, %p77
      %p79 = scmp.ne.s32.totalorder %s71, %s74
      %p80 = scmp.eq.s32.totalorder %s14, 0
      %p81 = por %p79, %p80
      %p82 = scmp.ne.s32.totalorder %s71, %s74
      %p83 = scmp.eq.s32.totalorder %s19, 1
      %p84 = por %p82, %p83
      %p85 = scmp.ne.s32.totalorder %s74, %s75
      %p86 = scmp.eq.s32.totalorder %s19, 0
      %p87 = por %p85, %p86
      %p88 = scmp.ne.s32.totalorder %s74, %s75
      %p89 = scmp.eq.s32.totalorder %s20, 1
      %p90 = por %p88, %p89
      %p92 = scmp.ne.s32.totalorder %s75, %s91
      %p93 = scmp.eq.s32.totalorder %s20, 0
      %p94 = por %p92, %p93
      %p95 = scmp.le.s32.totalorder 1, %s14
      %p96 = scmp.lt.s32.totalorder %s14, 3
      %p97 = pnand %p95, %p96
      %p98 = pneg %p97
      // Predicated region
      $region9: #{tpu_custom_call.1} parent=5 // pred_check
        _
      $region10: #{tpu_custom_call.1} parent=5 // pred_check_branch
        %100 = sbr.rel (%p97) target = $region12
      $region11: #{tpu_custom_call.1} parent=5 // pred_region
        %s101 = ssub.s32 %s14, 1
        // Predicated region
        $region13: #{tpu_custom_call.1} parent=11 // pred_check
          %p102 = pneg %p61
        $region14: #{tpu_custom_call.1} parent=11 // pred_check_branch
          %104 = sbr.rel (%p102) target = $region16
        $region15: #{tpu_custom_call.1} parent=11 // pred_region
          _
        $region16: #{tpu_custom_call.1} parent=11 // pred_fallthru
          _
      $region12: #{tpu_custom_call.1} parent=5 // pred_fallthru
        _
      %p105 = scmp.lt.s32.totalorder %s14, 2
      // Predicated region
      $region17: #{tpu_custom_call.1} parent=5 // pred_check
        %p106 = pneg %p105
      $region18: #{tpu_custom_call.1} parent=5 // pred_check_branch
        %108 = sbr.rel (%p106) target = $region20
      $region19: #{tpu_custom_call.1} parent=5 // pred_region
        // Predicated region
        $region21: #{tpu_custom_call.1} parent=19 // pred_check
          %p109 = pneg %p34
        $region22: #{tpu_custom_call.1} parent=19 // pred_check_branch
          %111 = sbr.rel (%p109) target = $region24
        $region23: #{tpu_custom_call.1} parent=19 // pred_region
          %s112 = sand.u32 %s24, 1
          %s113 = scalar_lea.sflag [#allocation3], %s112
          %s114 = sand.u32 %s24, 1
          %s115 = smul.addr %s114, 160
          %s116 = scalar_lea.vmem [#allocation2], %s115
          %s117 = smul.u32 2, %s14
          %s119 = ssub.s32 2560, 2560
          %120 = vsyncadd %s113, %s119
          %s121 = smul.addr %s117, 10
          %s122 = smul.addr %s121, 128
          %s123 = scalar_lea.hbm %s0, %s122
          %s124 = sshll.u32 %s116, 4
          %s125 = int_to_ptr.vmem [resolvable:$true] %s124
          %130 = dma.hbm_to_vmem [thread:$0]  %s123, 2560, %s125, %s113, 256, 256, 16
        $region24: #{tpu_custom_call.1} parent=19 // pred_fallthru
          _
      $region20: #{tpu_custom_call.1} parent=5 // pred_fallthru
        _
      %p131 = scmp.le.s32.totalorder 1, %s14
      %p132 = scmp.lt.s32.totalorder %s14, 3
      %p133 = pnand %p131, %p132
      %p134 = pneg %p133
      // Predicated region
      $region25: #{tpu_custom_call.1} parent=5 // pred_check
        _
      $region26: #{tpu_custom_call.1} parent=5 // pred_check_branch
        %136 = sbr.rel (%p133) target = $region28
      $region27: #{tpu_custom_call.1} parent=5 // pred_region
        %s137 = ssub.s32 %s14, 1
        %s138 = sand.u32 %s27, 1
        %s139 = scalar_lea.sflag [#allocation3], %s138
        %s140 = sand.u32 %s27, 1
        %s141 = smul.addr %s140, 160
        %s142 = scalar_lea.vmem [#allocation2], %s141
        // Predicated region
        $region29: #{tpu_custom_call.1} parent=27 // pred_check
          %p143 = pneg %p40
        $region30: #{tpu_custom_call.1} parent=27 // pred_check_branch
          %145 = sbr.rel (%p143) target = $region32
        $region31: #{tpu_custom_call.1} parent=27 // pred_region
          %146 = dma.done %s139, 2560
        $region32: #{tpu_custom_call.1} parent=27 // pred_fallthru
          _
        %s147 = sand.u32 %s27, 1
        %s148 = scalar_lea.sflag [#allocation3], %s147
        %s149 = sand.u32 %s27, 1
        %s150 = smul.addr %s149, 160
        %s151 = scalar_lea.vmem [#allocation2], %s150
        %p152 = pneg %p40
        %p153 = pneg %p37
        %p154 = pneg %p61
        %p155 = pneg %p58
        %p156 = pneg %p87
        %p157 = pneg %p84
        %s158 = sand.u32 %s74, 1
        %s159 = scalar_lea.sflag [#allocation4], %s158
        %s160 = sand.u32 %s74, 1
        %s161 = smul.addr %s160, 128
        %s162 = scalar_lea.vmem [#allocation5], %s161
        %s163 = smul.u32 2, %s19
        %s164 = smul.u32 2, %s19
        %v165 = vld [vmem:[%s1] sm:$0xff]
        %v166 = vld [vmem:[%s1 + $0x8] sm:$0xff]
        %v167 = vld [vmem:[%s1 + $0x10] sm:$0xff]
        %v168 = vld [vmem:[%s1 + $0x18] sm:$0xff]
        %v169 = vld [vmem:[%s1 + $0x20] sm:$0xff]
        %v170 = vld [vmem:[%s1 + $0x28] sm:$0xff]
        %v171 = vld [vmem:[%s1 + $0x30] sm:$0xff]
        %v172 = vld [vmem:[%s142] sm:$0xff]
        %v173 = vld [vmem:[%s142 + $0x8] sm:$0xff]
        %v174 = vld [vmem:[%s142 + $0x10] sm:$0xff]
        %v175 = vld [vmem:[%s142 + $0x18] sm:$0xff]
        %v176 = vld [vmem:[%s142 + $0x20] sm:$0xff]
        %v177 = vld [vmem:[%s142 + $0x28] sm:$0xff]
        %v178 = vld [vmem:[%s142 + $0x30] sm:$0xff]
        %v179 = vld [vmem:[%s142 + $0x38] sm:$0xff]
        %v180 = vld [vmem:[%s142 + $0x40] sm:$0xff]
        %v181 = vld [vmem:[%s142 + $0x48] sm:$0xff]
        %vm182 = vcmask 326656
        %v184 = vsel %vm182, %v165, 0
        %v187 = vsel %vm182, %v166, 0
        %v190 = vsel %vm182, %v167, 0
        %v193 = vsel %vm182, %v168, 0
        %v196 = vsel %vm182, %v169, 0
        %v199 = vsel %vm182, %v170, 0
        %v202 = vsel %vm182, %v171, 0
        %204 = vmatprep.subr.mxu0 %v173
        %205 = vmatpush1.msra.mxu0 %v172
        %206 = vmatprep.subr.mxu0 %v175
        %207 = vmatpush1.msra.mxu0 %v174
        %208 = vmatprep.subr.mxu0 %v177
        %209 = vmatpush1.msra.mxu0 %v176
        %210 = vmatprep.subr.mxu0 %v179
        %211 = vmatpush1.msra.mxu0 %v178
        %212 = vmatprep.subr.mxu0 %v181
        %213 = vmatpush1.msra.mxu0 %v180
        %214 = vmatprep.subr.mxu0 0.0
        %215 = vmatpush1.msra.mxu0 0.0
        %216 = vmatprep.subr.mxu0 0.0
        %217 = vmatpush1.msra.mxu0 0.0
        %218 = vmatprep.subr.mxu0 0.0
        %219 = vmatpush1.msra.mxu0 0.0
        %220 = vmatprep.subr.mxu0 0.0
        %221 = vmatpush1.msra.mxu0 0.0
        %222 = vmatprep.subr.mxu0 0.0
        %223 = vmatpush1.msra.mxu0 0.0
        %224 = vmatprep.subr.mxu0 0.0
        %225 = vmatpush1.msra.mxu0 0.0
        %226 = vmatprep.subr.mxu0 0.0
        %227 = vmatpush1.msra.mxu0 0.0
        %228 = vmatprep.subr.mxu0 0.0
        %229 = vmatpush1.msra.mxu0 0.0
        %230 = vmatprep.subr.mxu0 0.0
        %231 = vmatpush1.msra.mxu0 0.0
        %232 = vmatprep.subr.mxu0 0.0
        %233 = vmatpush1.msra.mxu0 0.0
        %234 = vmatprep.subr.mxu0 0.0
        %235 = vmatpush1.msra.mxu0 0.0
        %236 = vmatprep.subr.mxu0 0.0
        %237 = vmatpush1.msra.mxu0 0.0
        %238 = vmatprep.subr.mxu0 0.0
        %239 = vmatpush1.msra.mxu0 0.0
        %240 = vmatprep.subr.mxu0 0.0
        %241 = vmatpush1.msra.mxu0 0.0
        %242 = vmatprep.subr.mxu0 0.0
        %243 = vmatpush1.msra.mxu0 0.0
        %244 = vmatprep.subr.mxu0 0.0
        %245 = vmatpush1.msra.mxu0 0.0
        %246 = vmatprep.subr.mxu0 0.0
        %247 = vmatpush1.msra.mxu0 0.0
        %248 = vmatprep.subr.mxu0 0.0
        %249 = vmatpush1.msra.mxu0 0.0
        %250 = vmatprep.subr.mxu0 0.0
        %251 = vmatpush1.msra.mxu0 0.0
        %252 = vmatprep.subr.mxu0 0.0
        %253 = vmatpush1.msra.mxu0 0.0
        %254 = vmatprep.subr.mxu0 0.0
        %255 = vmatpush1.msra.mxu0 0.0
        %256 = vmatprep.subr.mxu0 0.0
        %257 = vmatpush1.msra.mxu0 0.0
        %258 = vmatprep.subr.mxu0 0.0
        %259 = vmatpush1.msra.mxu0 0.0
        %260 = vmatprep.subr.mxu0 0.0
        %261 = vmatpush1.msra.mxu0 0.0
        %262 = vmatprep.subr.mxu0 0.0
        %263 = vmatpush1.msra.mxu0 0.0
        %264 = vmatprep.subr.mxu0 0.0
        %265 = vmatpush1.msra.mxu0 0.0
        %266 = vmatprep.subr.mxu0 0.0
        %267 = vmatpush1.msra.mxu0 0.0
        %268 = vmatprep.mubr.f32.mxu0 0.0
        %269 = vmatmul.mubr.f32.gmra.mrb[0].mxu0 %v184
        %v270 = vpop.f32.mrb[0].mxu0
        %v271 = vadd.f32 0.0, %v270
        %v272 = vpop.f32.mrb[0].mxu0
        %v273 = vadd.f32 0.0, %v272
        %274 = vmatprep.mubr.f32.mxu0 0.0
        %275 = vmatmul.mubr.f32.gmra.mrb[0].mxu0 %v187
        %v276 = vpop.f32.mrb[0].mxu0
        %v277 = vadd.f32 0.0, %v276
        %v278 = vpop.f32.mrb[0].mxu0
        %v279 = vadd.f32 0.0, %v278
        %280 = vmatprep.mubr.f32.mxu0 0.0
        %281 = vmatmul.mubr.f32.gmra.mrb[0].mxu0 %v190
        %v282 = vpop.f32.mrb[0].mxu0
        %v283 = vadd.f32 0.0, %v282
        %v284 = vpop.f32.mrb[0].mxu0
        %v285 = vadd.f32 0.0, %v284
        %286 = vmatprep.mubr.f32.mxu0 0.0
        %287 = vmatmul.mubr.f32.gmra.mrb[0].mxu0 %v193
        %v288 = vpop.f32.mrb[0].mxu0
        %v289 = vadd.f32 0.0, %v288
        %v290 = vpop.f32.mrb[0].mxu0
        %v291 = vadd.f32 0.0, %v290
        %292 = vmatprep.mubr.f32.mxu0 0.0
        %293 = vmatmul.mubr.f32.gmra.mrb[0].mxu0 %v196
        %v294 = vpop.f32.mrb[0].mxu0
        %v295 = vadd.f32 0.0, %v294
        %v296 = vpop.f32.mrb[0].mxu0
        %v297 = vadd.f32 0.0, %v296
        %298 = vmatprep.mubr.f32.mxu0 0.0
        %299 = vmatmul.mubr.f32.gmra.mrb[0].mxu0 %v199
        %v300 = vpop.f32.mrb[0].mxu0
        %v301 = vadd.f32 0.0, %v300
        %v302 = vpop.f32.mrb[0].mxu0
        %v303 = vadd.f32 0.0, %v302
        %304 = vmatprep.mubr.f32.mxu0 0.0
        %305 = vmatmul.mubr.f32.gmra.mrb[0].mxu0 %v202
        %v306 = vpop.f32.mrb[0].mxu0
        %v307 = vadd.f32 0.0, %v306
        %v308 = vpop.f32.mrb[0].mxu0
        %v309 = vadd.f32 0.0, %v308
        %310 = vdwg.mxu0
        %311 = vxpose.xlu0.b32.start [1/16] %v277, 128
        %312 = vxpose.xlu0.b32.cont [2/16] 0.0, 128
        %313 = vxpose.xlu0.b32.cont [3/16] 0.0, 128
        %314 = vxpose.xlu0.b32.cont [4/16] 0.0, 128
        %315 = vxpose.xlu0.b32.cont [5/16] 0.0, 128
        %316 = vxpose.xlu0.b32.cont [6/16] 0.0, 128
        %317 = vxpose.xlu0.b32.cont [7/16] 0.0, 128
        %318 = vxpose.xlu0.b32.cont [8/16] 0.0, 128
        %319 = vxpose.xlu0.b32.cont [9/16] 0.0, 128
        %320 = vxpose.xlu0.b32.cont [10/16] 0.0, 128
        %321 = vxpose.xlu0.b32.cont [11/16] 0.0, 128
        %322 = vxpose.xlu0.b32.cont [12/16] 0.0, 128
        %323 = vxpose.xlu0.b32.cont [13/16] 0.0, 128
        %324 = vxpose.xlu0.b32.cont [14/16] 0.0, 128
        %325 = vxpose.xlu0.b32.cont [15/16] 0.0, 128
        %326 = vxpose.xlu0.b32.end [16/16] 0.0, 128
        %v327 = vpop.trf.xlu0
        %v328 = vpop.trf.xlu0
        %v329 = vpop.trf.xlu0
        %v330 = vpop.trf.xlu0
        %v331 = vpop.trf.xlu0
        %v332 = vpop.trf.xlu0
        %v333 = vpop.trf.xlu0
        %v334 = vpop.trf.xlu0
        %v335 = vpop.trf.xlu0
        %v336 = vpop.trf.xlu0
        %v337 = vpop.trf.xlu0
        %v338 = vpop.trf.xlu0
        %v339 = vpop.trf.xlu0
        %v340 = vpop.trf.xlu0
        %v341 = vpop.trf.xlu0
        %v342 = vpop.trf.xlu0
        %343 = vxpose.xlu0.b32.start [1/16] %v279, 128
        %344 = vxpose.xlu0.b32.cont [2/16] 0.0, 128
        %345 = vxpose.xlu0.b32.cont [3/16] 0.0, 128
        %346 = vxpose.xlu0.b32.cont [4/16] 0.0, 128
        %347 = vxpose.xlu0.b32.cont [5/16] 0.0, 128
        %348 = vxpose.xlu0.b32.cont [6/16] 0.0, 128
        %349 = vxpose.xlu0.b32.cont [7/16] 0.0, 128
        %350 = vxpose.xlu0.b32.cont [8/16] 0.0, 128
        %351 = vxpose.xlu0.b32.cont [9/16] 0.0, 128
        %352 = vxpose.xlu0.b32.cont [10/16] 0.0, 128
        %353 = vxpose.xlu0.b32.cont [11/16] 0.0, 128
        %354 = vxpose.xlu0.b32.cont [12/16] 0.0, 128
        %355 = vxpose.xlu0.b32.cont [13/16] 0.0, 128
        %356 = vxpose.xlu0.b32.cont [14/16] 0.0, 128
        %357 = vxpose.xlu0.b32.cont [15/16] 0.0, 128
        %358 = vxpose.xlu0.b32.end [16/16] 0.0, 128
        %v359 = vpop.trf.xlu0
        %v360 = vpop.trf.xlu0
        %v361 = vpop.trf.xlu0
        %v362 = vpop.trf.xlu0
        %v363 = vpop.trf.xlu0
        %v364 = vpop.trf.xlu0
        %v365 = vpop.trf.xlu0
        %v366 = vpop.trf.xlu0
        %v367 = vpop.trf.xlu0
        %v368 = vpop.trf.xlu0
        %v369 = vpop.trf.xlu0
        %v370 = vpop.trf.xlu0
        %v371 = vpop.trf.xlu0
        %v372 = vpop.trf.xlu0
        %v373 = vpop.trf.xlu0
        %v374 = vpop.trf.xlu0
        %vm375 = vcmask 64512
        %v377 = vsel %vm375, %v327, 0
        %v380 = vsel %vm375, %v328, 0
        %v383 = vsel %vm375, %v329, 0
        %v386 = vsel %vm375, %v330, 0
        %v389 = vsel %vm375, %v331, 0
        %v392 = vsel %vm375, %v332, 0
        %v395 = vsel %vm375, %v333, 0
        %v398 = vsel %vm375, %v334, 0
        %v401 = vsel %vm375, %v335, 0
        %v404 = vsel %vm375, %v336, 0
        %v407 = vsel %vm375, %v337, 0
        %v410 = vsel %vm375, %v338, 0
        %v413 = vsel %vm375, %v339, 0
        %v416 = vsel %vm375, %v340, 0
        %v419 = vsel %vm375, %v341, 0
        %v422 = vsel %vm375, %v342, 0
        %v425 = vsel %vm375, %v359, 0
        %v428 = vsel %vm375, %v360, 0
        %v431 = vsel %vm375, %v361, 0
        %v434 = vsel %vm375, %v362, 0
        %v437 = vsel %vm375, %v363, 0
        %v440 = vsel %vm375, %v364, 0
        %v443 = vsel %vm375, %v365, 0
        %v446 = vsel %vm375, %v366, 0
        %v449 = vsel %vm375, %v367, 0
        %v452 = vsel %vm375, %v368, 0
        %v455 = vsel %vm375, %v369, 0
        %v458 = vsel %vm375, %v370, 0
        %v461 = vsel %vm375, %v371, 0
        %v464 = vsel %vm375, %v372, 0
        %v467 = vsel %vm375, %v373, 0
        %v470 = vsel %vm375, %v374, 0
        %472 = vmatprep.subr.mxu0 %v273
        %473 = vmatpush1.msra.mxu0 %v271
        %474 = vmatprep.subr.mxu0 0.0
        %475 = vmatpush1.msra.mxu0 0.0
        %476 = vmatprep.subr.mxu0 0.0
        %477 = vmatpush1.msra.mxu0 0.0
        %478 = vmatprep.subr.mxu0 0.0
        %479 = vmatpush1.msra.mxu0 0.0
        %480 = vmatprep.subr.mxu0 0.0
        %481 = vmatpush1.msra.mxu0 0.0
        %482 = vmatprep.subr.mxu0 0.0
        %483 = vmatpush1.msra.mxu0 0.0
        %484 = vmatprep.subr.mxu0 0.0
        %485 = vmatpush1.msra.mxu0 0.0
        %486 = vmatprep.subr.mxu0 0.0
        %487 = vmatpush1.msra.mxu0 0.0
        %488 = vmatprep.subr.mxu0 0.0
        %489 = vmatpush1.msra.mxu0 0.0
        %490 = vmatprep.subr.mxu0 0.0
        %491 = vmatpush1.msra.mxu0 0.0
        %492 = vmatprep.subr.mxu0 0.0
        %493 = vmatpush1.msra.mxu0 0.0
        %494 = vmatprep.subr.mxu0 0.0
        %495 = vmatpush1.msra.mxu0 0.0
        %496 = vmatprep.subr.mxu0 0.0
        %497 = vmatpush1.msra.mxu0 0.0
        %498 = vmatprep.subr.mxu0 0.0
        %499 = vmatpush1.msra.mxu0 0.0
        %500 = vmatprep.subr.mxu0 0.0
        %501 = vmatpush1.msra.mxu0 0.0
        %502 = vmatprep.subr.mxu0 0.0
        %503 = vmatpush1.msra.mxu0 0.0
        %504 = vmatprep.subr.mxu0 0.0
        %505 = vmatpush1.msra.mxu0 0.0
        %506 = vmatprep.subr.mxu0 0.0
        %507 = vmatpush1.msra.mxu0 0.0
        %508 = vmatprep.subr.mxu0 0.0
        %509 = vmatpush1.msra.mxu0 0.0
        %510 = vmatprep.subr.mxu0 0.0
        %511 = vmatpush1.msra.mxu0 0.0
        %512 = vmatprep.subr.mxu0 0.0
        %513 = vmatpush1.msra.mxu0 0.0
        %514 = vmatprep.subr.mxu0 0.0
        %515 = vmatpush1.msra.mxu0 0.0
        %516 = vmatprep.subr.mxu0 0.0
        %517 = vmatpush1.msra.mxu0 0.0
        %518 = vmatprep.subr.mxu0 0.0
        %519 = vmatpush1.msra.mxu0 0.0
        %520 = vmatprep.subr.mxu0 0.0
        %521 = vmatpush1.msra.mxu0 0.0
        %522 = vmatprep.subr.mxu0 0.0
        %523 = vmatpush1.msra.mxu0 0.0
        %524 = vmatprep.subr.mxu0 0.0
        %525 = vmatpush1.msra.mxu0 0.0
        %526 = vmatprep.subr.mxu0 0.0
        %527 = vmatpush1.msra.mxu0 0.0
        %528 = vmatprep.subr.mxu0 0.0
        %529 = vmatpush1.msra.mxu0 0.0
        %530 = vmatprep.subr.mxu0 0.0
        %531 = vmatpush1.msra.mxu0 0.0
        %532 = vmatprep.subr.mxu0 0.0
        %533 = vmatpush1.msra.mxu0 0.0
        %534 = vmatprep.subr.mxu0 0.0
        %535 = vmatpush1.msra.mxu0 0.0
        %536 = vmatprep.mubr.f32.mxu0 0.0
        %537 = vmatmul.mubr.f32.gmra.mrb[0].mxu0 %v377
        %v538 = vpop.f32.mrb[0].mxu0
        %v539 = vadd.f32 0.0, %v538
        %v540 = vpop.f32.mrb[0].mxu0
        %v541 = vadd.f32 0.0, %v540
        %542 = vmatprep.mubr.f32.mxu0 0.0
        %543 = vmatmul.mubr.f32.gmra.mrb[0].mxu0 %v380
        %v544 = vpop.f32.mrb[0].mxu0
        %v545 = vadd.f32 0.0, %v544
        %v546 = vpop.f32.mrb[0].mxu0
        %v547 = vadd.f32 0.0, %v546
        %548 = vmatprep.mubr.f32.mxu0 0.0
        %549 = vmatmul.mubr.f32.gmra.mrb[0].mxu0 %v383
        %v550 = vpop.f32.mrb[0].mxu0
        %v551 = vadd.f32 0.0, %v550
        %v552 = vpop.f32.mrb[0].mxu0
        %v553 = vadd.f32 0.0, %v552
        %554 = vmatprep.mubr.f32.mxu0 0.0
        %555 = vmatmul.mubr.f32.gmra.mrb[0].mxu0 %v386
        %v556 = vpop.f32.mrb[0].mxu0
        %v557 = vadd.f32 0.0, %v556
        %v558 = vpop.f32.mrb[0].mxu0
        %v559 = vadd.f32 0.0, %v558
        %560 = vmatprep.mubr.f32.mxu0 0.0
        %561 = vmatmul.mubr.f32.gmra.mrb[0].mxu0 %v389
        %v562 = vpop.f32.mrb[0].mxu0
        %v563 = vadd.f32 0.0, %v562
        %v564 = vpop.f32.mrb[0].mxu0
        %v565 = vadd.f32 0.0, %v564
        %566 = vmatprep.mubr.f32.mxu0 0.0
        %567 = vmatmul.mubr.f32.gmra.mrb[0].mxu0 %v392
        %v568 = vpop.f32.mrb[0].mxu0
        %v569 = vadd.f32 0.0, %v568
        %v570 = vpop.f32.mrb[0].mxu0
        %v571 = vadd.f32 0.0, %v570
        %572 = vmatprep.mubr.f32.mxu0 0.0
        %573 = vmatmul.mubr.f32.gmra.mrb[0].mxu0 %v395
        %v574 = vpop.f32.mrb[0].mxu0
        %v575 = vadd.f32 0.0, %v574
        %v576 = vpop.f32.mrb[0].mxu0
        %v577 = vadd.f32 0.0, %v576
        %578 = vmatprep.mubr.f32.mxu0 0.0
        %579 = vmatmul.mubr.f32.gmra.mrb[0].mxu0 %v398
        %v580 = vpop.f32.mrb[0].mxu0
        %v581 = vadd.f32 0.0, %v580
        %v582 = vpop.f32.mrb[0].mxu0
        %v583 = vadd.f32 0.0, %v582
        %584 = vmatprep.mubr.f32.mxu0 0.0
        %585 = vmatmul.mubr.f32.gmra.mrb[0].mxu0 %v401
        %v586 = vpop.f32.mrb[0].mxu0
        %v587 = vadd.f32 0.0, %v586
        %v588 = vpop.f32.mrb[0].mxu0
        %v589 = vadd.f32 0.0, %v588
        %590 = vmatprep.mubr.f32.mxu0 0.0
        %591 = vmatmul.mubr.f32.gmra.mrb[0].mxu0 %v404
        %v592 = vpop.f32.mrb[0].mxu0
        %v593 = vadd.f32 0.0, %v592
        %v594 = vpop.f32.mrb[0].mxu0
        %v595 = vadd.f32 0.0, %v594
        %596 = vmatprep.mubr.f32.mxu0 0.0
        %597 = vmatmul.mubr.f32.gmra.mrb[0].mxu0 %v407
        %v598 = vpop.f32.mrb[0].mxu0
        %v599 = vadd.f32 0.0, %v598
        %v600 = vpop.f32.mrb[0].mxu0
        %v601 = vadd.f32 0.0, %v600
        %602 = vmatprep.mubr.f32.mxu0 0.0
        %603 = vmatmul.mubr.f32.gmra.mrb[0].mxu0 %v410
        %v604 = vpop.f32.mrb[0].mxu0
        %v605 = vadd.f32 0.0, %v604
        %v606 = vpop.f32.mrb[0].mxu0
        %v607 = vadd.f32 0.0, %v606
        %608 = vmatprep.mubr.f32.mxu0 0.0
        %609 = vmatmul.mubr.f32.gmra.mrb[0].mxu0 %v413
        %v610 = vpop.f32.mrb[0].mxu0
        %v611 = vadd.f32 0.0, %v610
        %v612 = vpop.f32.mrb[0].mxu0
        %v613 = vadd.f32 0.0, %v612
        %614 = vmatprep.mubr.f32.mxu0 0.0
        %615 = vmatmul.mubr.f32.gmra.mrb[0].mxu0 %v416
        %v616 = vpop.f32.mrb[0].mxu0
        %v617 = vadd.f32 0.0, %v616
        %v618 = vpop.f32.mrb[0].mxu0
        %v619 = vadd.f32 0.0, %v618
        %620 = vmatprep.mubr.f32.mxu0 0.0
        %621 = vmatmul.mubr.f32.gmra.mrb[0].mxu0 %v419
        %v622 = vpop.f32.mrb[0].mxu0
        %v623 = vadd.f32 0.0, %v622
        %v624 = vpop.f32.mrb[0].mxu0
        %v625 = vadd.f32 0.0, %v624
        %626 = vmatprep.mubr.f32.mxu0 0.0
        %627 = vmatmul.mubr.f32.gmra.mrb[0].mxu0 %v422
        %v628 = vpop.f32.mrb[0].mxu0
        %v629 = vadd.f32 0.0, %v628
        %v630 = vpop.f32.mrb[0].mxu0
        %v631 = vadd.f32 0.0, %v630
        %632 = vmatprep.mubr.f32.mxu0 0.0
        %633 = vmatmul.mubr.f32.gmra.mrb[0].mxu0 %v425
        %v634 = vpop.f32.mrb[0].mxu0
        %v635 = vadd.f32 0.0, %v634
        %v636 = vpop.f32.mrb[0].mxu0
        %v637 = vadd.f32 0.0, %v636
        %638 = vmatprep.mubr.f32.mxu0 0.0
        %639 = vmatmul.mubr.f32.gmra.mrb[0].mxu0 %v428
        %v640 = vpop.f32.mrb[0].mxu0
        %v641 = vadd.f32 0.0, %v640
        %v642 = vpop.f32.mrb[0].mxu0
        %v643 = vadd.f32 0.0, %v642
        %644 = vmatprep.mubr.f32.mxu0 0.0
        %645 = vmatmul.mubr.f32.gmra.mrb[0].mxu0 %v431
        %v646 = vpop.f32.mrb[0].mxu0
        %v647 = vadd.f32 0.0, %v646
        %v648 = vpop.f32.mrb[0].mxu0
        %v649 = vadd.f32 0.0, %v648
        %650 = vmatprep.mubr.f32.mxu0 0.0
        %651 = vmatmul.mubr.f32.gmra.mrb[0].mxu0 %v434
        %v652 = vpop.f32.mrb[0].mxu0
        %v653 = vadd.f32 0.0, %v652
        %v654 = vpop.f32.mrb[0].mxu0
        %v655 = vadd.f32 0.0, %v654
        %656 = vmatprep.mubr.f32.mxu0 0.0
        %657 = vmatmul.mubr.f32.gmra.mrb[0].mxu0 %v437
        %v658 = vpop.f32.mrb[0].mxu0
        %v659 = vadd.f32 0.0, %v658
        %v660 = vpop.f32.mrb[0].mxu0
        %v661 = vadd.f32 0.0, %v660
        %662 = vmatprep.mubr.f32.mxu0 0.0
        %663 = vmatmul.mubr.f32.gmra.mrb[0].mxu0 %v440
        %v664 = vpop.f32.mrb[0].mxu0
        %v665 = vadd.f32 0.0, %v664
        %v666 = vpop.f32.mrb[0].mxu0
        %v667 = vadd.f32 0.0, %v666
        %668 = vmatprep.mubr.f32.mxu0 0.0
        %669 = vmatmul.mubr.f32.gmra.mrb[0].mxu0 %v443
        %v670 = vpop.f32.mrb[0].mxu0
        %v671 = vadd.f32 0.0, %v670
        %v672 = vpop.f32.mrb[0].mxu0
        %v673 = vadd.f32 0.0, %v672
        %674 = vmatprep.mubr.f32.mxu0 0.0
        %675 = vmatmul.mubr.f32.gmra.mrb[0].mxu0 %v446
        %v676 = vpop.f32.mrb[0].mxu0
        %v677 = vadd.f32 0.0, %v676
        %v678 = vpop.f32.mrb[0].mxu0
        %v679 = vadd.f32 0.0, %v678
        %680 = vmatprep.mubr.f32.mxu0 0.0
        %681 = vmatmul.mubr.f32.gmra.mrb[0].mxu0 %v449
        %v682 = vpop.f32.mrb[0].mxu0
        %v683 = vadd.f32 0.0, %v682
        %v684 = vpop.f32.mrb[0].mxu0
        %v685 = vadd.f32 0.0, %v684
        %686 = vmatprep.mubr.f32.mxu0 0.0
        %687 = vmatmul.mubr.f32.gmra.mrb[0].mxu0 %v452
        %v688 = vpop.f32.mrb[0].mxu0
        %v689 = vadd.f32 0.0, %v688
        %v690 = vpop.f32.mrb[0].mxu0
        %v691 = vadd.f32 0.0, %v690
        %692 = vmatprep.mubr.f32.mxu0 0.0
        %693 = vmatmul.mubr.f32.gmra.mrb[0].mxu0 %v455
        %v694 = vpop.f32.mrb[0].mxu0
        %v695 = vadd.f32 0.0, %v694
        %v696 = vpop.f32.mrb[0].mxu0
        %v697 = vadd.f32 0.0, %v696
        %698 = vmatprep.mubr.f32.mxu0 0.0
        %699 = vmatmul.mubr.f32.gmra.mrb[0].mxu0 %v458
        %v700 = vpop.f32.mrb[0].mxu0
        %v701 = vadd.f32 0.0, %v700
        %v702 = vpop.f32.mrb[0].mxu0
        %v703 = vadd.f32 0.0, %v702
        %704 = vmatprep.mubr.f32.mxu0 0.0
        %705 = vmatmul.mubr.f32.gmra.mrb[0].mxu0 %v461
        %v706 = vpop.f32.mrb[0].mxu0
        %v707 = vadd.f32 0.0, %v706
        %v708 = vpop.f32.mrb[0].mxu0
        %v709 = vadd.f32 0.0, %v708
        %710 = vmatprep.mubr.f32.mxu0 0.0
        %711 = vmatmul.mubr.f32.gmra.mrb[0].mxu0 %v464
        %v712 = vpop.f32.mrb[0].mxu0
        %v713 = vadd.f32 0.0, %v712
        %v714 = vpop.f32.mrb[0].mxu0
        %v715 = vadd.f32 0.0, %v714
        %716 = vmatprep.mubr.f32.mxu0 0.0
        %717 = vmatmul.mubr.f32.gmra.mrb[0].mxu0 %v467
        %v718 = vpop.f32.mrb[0].mxu0
        %v719 = vadd.f32 0.0, %v718
        %v720 = vpop.f32.mrb[0].mxu0
        %v721 = vadd.f32 0.0, %v720
        %722 = vmatprep.mubr.f32.mxu0 0.0
        %723 = vmatmul.mubr.f32.gmra.mrb[0].mxu0 %v470
        %v724 = vpop.f32.mrb[0].mxu0
        %v725 = vadd.f32 0.0, %v724
        %v726 = vpop.f32.mrb[0].mxu0
        %v727 = vadd.f32 0.0, %v726
        %728 = vdwg.mxu0
        %v729 = vmax.f32 %v539, %v551
        %v730 = vmax.f32 %v545, %v557
        %v731 = vmax.f32 %v729, %v563
        %v732 = vmax.f32 %v730, %v569
        %v733 = vmax.f32 %v731, %v575
        %v734 = vmax.f32 %v732, %v581
        %v735 = vmax.f32 %v733, %v587
        %v736 = vmax.f32 %v734, %v593
        %v737 = vmax.f32 %v735, %v599
        %v738 = vmax.f32 %v736, %v605
        %v739 = vmax.f32 %v737, %v611
        %v740 = vmax.f32 %v738, %v617
        %v741 = vmax.f32 %v739, %v623
        %v742 = vmax.f32 %v740, %v629
        %v743 = vmax.f32 %v741, %v635
        %v744 = vmax.f32 %v742, %v641
        %v745 = vmax.f32 %v743, %v647
        %v746 = vmax.f32 %v744, %v653
        %v747 = vmax.f32 %v745, %v659
        %v748 = vmax.f32 %v746, %v665
        %v749 = vmax.f32 %v747, %v671
        %v750 = vmax.f32 %v748, %v677
        %v751 = vmax.f32 %v749, %v683
        %v752 = vmax.f32 %v750, %v689
        %v753 = vmax.f32 %v751, %v695
        %v754 = vmax.f32 %v752, %v701
        %v755 = vmax.f32 %v753, %v707
        %v756 = vmax.f32 %v754, %v713
        %v757 = vmax.f32 %v755, %v719
        %v758 = vmax.f32 %v756, %v725
        %v759 = vmax.f32 %v757, %v758
        %v760 = vrot.slane %v759, 4
        %v761 = vmax.f32 %v759, %v760
        %v762 = vrot.slane %v761, 2
        %v763 = vmax.f32 %v761, %v762
        %v764 = vrot.slane %v763, 1
        %v765 = vmax.f32 %v763, %v764
        %v766 = vmax.f32 %v541, %v553
        %v767 = vmax.f32 %v547, %v559
        %v768 = vmax.f32 %v766, %v565
        %v769 = vmax.f32 %v767, %v571
        %v770 = vmax.f32 %v768, %v577
        %v771 = vmax.f32 %v769, %v583
        %v772 = vmax.f32 %v770, %v589
        %v773 = vmax.f32 %v771, %v595
        %v774 = vmax.f32 %v772, %v601
        %v775 = vmax.f32 %v773, %v607
        %v776 = vmax.f32 %v774, %v613
        %v777 = vmax.f32 %v775, %v619
        %v778 = vmax.f32 %v776, %v625
        %v779 = vmax.f32 %v777, %v631
        %v780 = vmax.f32 %v778, %v637
        %v781 = vmax.f32 %v779, %v643
        %v782 = vmax.f32 %v780, %v649
        %v783 = vmax.f32 %v781, %v655
        %v784 = vmax.f32 %v782, %v661
        %v785 = vmax.f32 %v783, %v667
        %v786 = vmax.f32 %v784, %v673
        %v787 = vmax.f32 %v785, %v679
        %v788 = vmax.f32 %v786, %v685
        %v789 = vmax.f32 %v787, %v691
        %v790 = vmax.f32 %v788, %v697
        %v791 = vmax.f32 %v789, %v703
        %v792 = vmax.f32 %v790, %v709
        %v793 = vmax.f32 %v791, %v715
        %v794 = vmax.f32 %v792, %v721
        %v795 = vmax.f32 %v793, %v727
        %v796 = vmax.f32 %v794, %v795
        %v797 = vrot.slane %v796, 4
        %v798 = vmax.f32 %v796, %v797
        %v799 = vrot.slane %v798, 2
        %v800 = vmax.f32 %v798, %v799
        %v801 = vrot.slane %v800, 1
        %v802 = vmax.f32 %v800, %v801
        %v803 = vsub.f32 %v539, %v765
        %v804 = vsub.f32 %v541, %v802
        %v805 = vsub.f32 %v545, %v765
        %v806 = vsub.f32 %v547, %v802
        %v807 = vsub.f32 %v551, %v765
        %v808 = vsub.f32 %v553, %v802
        %v809 = vsub.f32 %v557, %v765
        %v810 = vsub.f32 %v559, %v802
        %v811 = vsub.f32 %v563, %v765
        %v812 = vsub.f32 %v565, %v802
        %v813 = vsub.f32 %v569, %v765
        %v814 = vsub.f32 %v571, %v802
        %v815 = vsub.f32 %v575, %v765
        %v816 = vsub.f32 %v577, %v802
        %v817 = vsub.f32 %v581, %v765
        %v818 = vsub.f32 %v583, %v802
        %v819 = vsub.f32 %v587, %v765
        %v820 = vsub.f32 %v589, %v802
        %v821 = vsub.f32 %v593, %v765
        %v822 = vsub.f32 %v595, %v802
        %v823 = vsub.f32 %v599, %v765
        %v824 = vsub.f32 %v601, %v802
        %v825 = vsub.f32 %v605, %v765
        %v826 = vsub.f32 %v607, %v802
        %v827 = vsub.f32 %v611, %v765
        %v828 = vsub.f32 %v613, %v802
        %v829 = vsub.f32 %v617, %v765
        %v830 = vsub.f32 %v619, %v802
        %v831 = vsub.f32 %v623, %v765
        %v832 = vsub.f32 %v625, %v802
        %v833 = vsub.f32 %v629, %v765
        %v834 = vsub.f32 %v631, %v802
        %v835 = vsub.f32 %v635, %v765
        %v836 = vsub.f32 %v637, %v802
        %v837 = vsub.f32 %v641, %v765
        %v838 = vsub.f32 %v643, %v802
        %v839 = vsub.f32 %v647, %v765
        %v840 = vsub.f32 %v649, %v802
        %v841 = vsub.f32 %v653, %v765
        %v842 = vsub.f32 %v655, %v802
        %v843 = vsub.f32 %v659, %v765
        %v844 = vsub.f32 %v661, %v802
        %v845 = vsub.f32 %v665, %v765
        %v846 = vsub.f32 %v667, %v802
        %v847 = vsub.f32 %v671, %v765
        %v848 = vsub.f32 %v673, %v802
        %v849 = vsub.f32 %v677, %v765
        %v850 = vsub.f32 %v679, %v802
        %v851 = vsub.f32 %v683, %v765
        %v852 = vsub.f32 %v685, %v802
        %v853 = vsub.f32 %v689, %v765
        %v854 = vsub.f32 %v691, %v802
        %v855 = vsub.f32 %v695, %v765
        %v856 = vsub.f32 %v697, %v802
        %v857 = vsub.f32 %v701, %v765
        %v858 = vsub.f32 %v703, %v802
        %v859 = vsub.f32 %v707, %v765
        %v860 = vsub.f32 %v709, %v802
        %v861 = vsub.f32 %v713, %v765
        %v862 = vsub.f32 %v715, %v802
        %v863 = vsub.f32 %v719, %v765
        %v864 = vsub.f32 %v721, %v802
        %v865 = vsub.f32 %v725, %v765
        %v866 = vsub.f32 %v727, %v802
        %v867 = vmul.f32 %v803, 1.442695
        %v868 = vpow.pop %v867
        %v869 = vmul.f32 %v804, 1.442695
        %v870 = vpow.pop %v869
        %v871 = vmul.f32 %v805, 1.442695
        %v872 = vpow.pop %v871
        %v873 = vmul.f32 %v806, 1.442695
        %v874 = vpow.pop %v873
        %v875 = vmul.f32 %v807, 1.442695
        %v876 = vpow.pop %v875
        %v877 = vmul.f32 %v808, 1.442695
        %v878 = vpow.pop %v877
        %v879 = vmul.f32 %v809, 1.442695
        %v880 = vpow.pop %v879
        %v881 = vmul.f32 %v810, 1.442695
        %v882 = vpow.pop %v881
        %v883 = vmul.f32 %v811, 1.442695
        %v884 = vpow.pop %v883
        %v885 = vmul.f32 %v812, 1.442695
        %v886 = vpow.pop %v885
        %v887 = vmul.f32 %v813, 1.442695
        %v888 = vpow.pop %v887
        %v889 = vmul.f32 %v814, 1.442695
        %v890 = vpow.pop %v889
        %v891 = vmul.f32 %v815, 1.442695
        %v892 = vpow.pop %v891
        %v893 = vmul.f32 %v816, 1.442695
        %v894 = vpow.pop %v893
        %v895 = vmul.f32 %v817, 1.442695
        %v896 = vpow.pop %v895
        %v897 = vmul.f32 %v818, 1.442695
        %v898 = vpow.pop %v897
        %v899 = vmul.f32 %v819, 1.442695
        %v900 = vpow.pop %v899
        %v901 = vmul.f32 %v820, 1.442695
        %v902 = vpow.pop %v901
        %v903 = vmul.f32 %v821, 1.442695
        %v904 = vpow.pop %v903
        %v905 = vmul.f32 %v822, 1.442695
        %v906 = vpow.pop %v905
        %v907 = vmul.f32 %v823, 1.442695
        %v908 = vpow.pop %v907
        %v909 = vmul.f32 %v824, 1.442695
        %v910 = vpow.pop %v909
        %v911 = vmul.f32 %v825, 1.442695
        %v912 = vpow.pop %v911
        %v913 = vmul.f32 %v826, 1.442695
        %v914 = vpow.pop %v913
        %v915 = vmul.f32 %v827, 1.442695
        %v916 = vpow.pop %v915
        %v917 = vmul.f32 %v828, 1.442695
        %v918 = vpow.pop %v917
        %v919 = vmul.f32 %v829, 1.442695
        %v920 = vpow.pop %v919
        %v921 = vmul.f32 %v830, 1.442695
        %v922 = vpow.pop %v921
        %v923 = vmul.f32 %v831, 1.442695
        %v924 = vpow.pop %v923
        %v925 = vmul.f32 %v832, 1.442695
        %v926 = vpow.pop %v925
        %v927 = vmul.f32 %v833, 1.442695
        %v928 = vpow.pop %v927
        %v929 = vmul.f32 %v834, 1.442695
        %v930 = vpow.pop %v929
        %v931 = vmul.f32 %v835, 1.442695
        %v932 = vpow.pop %v931
        %v933 = vmul.f32 %v836, 1.442695
        %v934 = vpow.pop %v933
        %v935 = vmul.f32 %v837, 1.442695
        %v936 = vpow.pop %v935
        %v937 = vmul.f32 %v838, 1.442695
        %v938 = vpow.pop %v937
        %v939 = vmul.f32 %v839, 1.442695
        %v940 = vpow.pop %v939
        %v941 = vmul.f32 %v840, 1.442695
        %v942 = vpow.pop %v941
        %v943 = vmul.f32 %v841, 1.442695
        %v944 = vpow.pop %v943
        %v945 = vmul.f32 %v842, 1.442695
        %v946 = vpow.pop %v945
        %v947 = vmul.f32 %v843, 1.442695
        %v948 = vpow.pop %v947
        %v949 = vmul.f32 %v844, 1.442695
        %v950 = vpow.pop %v949
        %v951 = vmul.f32 %v845, 1.442695
        %v952 = vpow.pop %v951
        %v953 = vmul.f32 %v846, 1.442695
        %v954 = vpow.pop %v953
        %v955 = vmul.f32 %v847, 1.442695
        %v956 = vpow.pop %v955
        %v957 = vmul.f32 %v848, 1.442695
        %v958 = vpow.pop %v957
        %v959 = vmul.f32 %v849, 1.442695
        %v960 = vpow.pop %v959
        %v961 = vmul.f32 %v850, 1.442695
        %v962 = vpow.pop %v961
        %v963 = vmul.f32 %v851, 1.442695
        %v964 = vpow.pop %v963
        %v965 = vmul.f32 %v852, 1.442695
        %v966 = vpow.pop %v965
        %v967 = vmul.f32 %v853, 1.442695
        %v968 = vpow.pop %v967
        %v969 = vmul.f32 %v854, 1.442695
        %v970 = vpow.pop %v969
        %v971 = vmul.f32 %v855, 1.442695
        %v972 = vpow.pop %v971
        %v973 = vmul.f32 %v856, 1.442695
        %v974 = vpow.pop %v973
        %v975 = vmul.f32 %v857, 1.442695
        %v976 = vpow.pop %v975
        %v977 = vmul.f32 %v858, 1.442695
        %v978 = vpow.pop %v977
        %v979 = vmul.f32 %v859, 1.442695
        %v980 = vpow.pop %v979
        %v981 = vmul.f32 %v860, 1.442695
        %v982 = vpow.pop %v981
        %v983 = vmul.f32 %v861, 1.442695
        %v984 = vpow.pop %v983
        %v985 = vmul.f32 %v862, 1.442695
        %v986 = vpow.pop %v985
        %v987 = vmul.f32 %v863, 1.442695
        %v988 = vpow.pop %v987
        %v989 = vmul.f32 %v864, 1.442695
        %v990 = vpow.pop %v989
        %v991 = vmul.f32 %v865, 1.442695
        %v992 = vpow.pop %v991
        %v993 = vmul.f32 %v866, 1.442695
        %v994 = vpow.pop %v993
        %995 = vmatprep.subr.mxu0 %v870
        %996 = vmatpush1.msra.mxu0 %v868
        %997 = vmatprep.subr.mxu0 %v874
        %998 = vmatpush1.msra.mxu0 %v872
        %999 = vmatprep.subr.mxu0 %v878
        %1000 = vmatpush1.msra.mxu0 %v876
        %1001 = vmatprep.subr.mxu0 %v882
        %1002 = vmatpush1.msra.mxu0 %v880
        %1003 = vmatprep.subr.mxu0 %v886
        %1004 = vmatpush1.msra.mxu0 %v884
        %1005 = vmatprep.subr.mxu0 %v890
        %1006 = vmatpush1.msra.mxu0 %v888
        %1007 = vmatprep.subr.mxu0 %v894
        %1008 = vmatpush1.msra.mxu0 %v892
        %1009 = vmatprep.subr.mxu0 %v898
        %1010 = vmatpush1.msra.mxu0 %v896
        %1011 = vmatprep.subr.mxu0 %v902
        %1012 = vmatpush1.msra.mxu0 %v900
        %1013 = vmatprep.subr.mxu0 %v906
        %1014 = vmatpush1.msra.mxu0 %v904
        %1015 = vmatprep.subr.mxu0 %v910
        %1016 = vmatpush1.msra.mxu0 %v908
        %1017 = vmatprep.subr.mxu0 %v914
        %1018 = vmatpush1.msra.mxu0 %v912
        %1019 = vmatprep.subr.mxu0 %v918
        %1020 = vmatpush1.msra.mxu0 %v916
        %1021 = vmatprep.subr.mxu0 %v922
        %1022 = vmatpush1.msra.mxu0 %v920
        %1023 = vmatprep.subr.mxu0 %v926
        %1024 = vmatpush1.msra.mxu0 %v924
        %1025 = vmatprep.subr.mxu0 %v930
        %1026 = vmatpush1.msra.mxu0 %v928
        %1027 = vmatprep.subr.mxu0 %v934
        %1028 = vmatpush1.msra.mxu0 %v932
        %1029 = vmatprep.subr.mxu0 %v938
        %1030 = vmatpush1.msra.mxu0 %v936
        %1031 = vmatprep.subr.mxu0 %v942
        %1032 = vmatpush1.msra.mxu0 %v940
        %1033 = vmatprep.subr.mxu0 %v946
        %1034 = vmatpush1.msra.mxu0 %v944
        %1035 = vmatprep.subr.mxu0 %v950
        %1036 = vmatpush1.msra.mxu0 %v948
        %1037 = vmatprep.subr.mxu0 %v954
        %1038 = vmatpush1.msra.mxu0 %v952
        %1039 = vmatprep.subr.mxu0 %v958
        %1040 = vmatpush1.msra.mxu0 %v956
        %1041 = vmatprep.subr.mxu0 %v962
        %1042 = vmatpush1.msra.mxu0 %v960
        %1043 = vmatprep.subr.mxu0 %v966
        %1044 = vmatpush1.msra.mxu0 %v964
        %1045 = vmatprep.subr.mxu0 %v970
        %1046 = vmatpush1.msra.mxu0 %v968
        %1047 = vmatprep.subr.mxu0 %v974
        %1048 = vmatpush1.msra.mxu0 %v972
        %1049 = vmatprep.subr.mxu0 %v978
        %1050 = vmatpush1.msra.mxu0 %v976
        %1051 = vmatprep.subr.mxu0 %v982
        %1052 = vmatpush1.msra.mxu0 %v980
        %1053 = vmatprep.subr.mxu0 %v986
        %1054 = vmatpush1.msra.mxu0 %v984
        %1055 = vmatprep.subr.mxu0 %v990
        %1056 = vmatpush1.msra.mxu0 %v988
        %1057 = vmatprep.subr.mxu0 %v994
        %1058 = vmatpush1.msra.mxu0 %v992
        %1059 = vmatprep.mubr.f32.mxu0 %v285
        %1060 = vmatmul.mubr.f32.gmra.mrb[0].mxu0 %v283
        %v1061 = vpop.f32.mrb[0].mxu0
        %v1062 = vadd.f32 0.0, %v1061
        %v1063 = vpop.f32.mrb[0].mxu0
        %v1064 = vadd.f32 0.0, %v1063
        %1065 = vmatprep.mubr.f32.mxu0 %v291
        %1066 = vmatmul.mubr.f32.gmra.mrb[0].mxu0 %v289
        %v1067 = vpop.f32.mrb[0].mxu0
        %v1068 = vadd.f32 0.0, %v1067
        %v1069 = vpop.f32.mrb[0].mxu0
        %v1070 = vadd.f32 0.0, %v1069
        %1071 = vmatprep.mubr.f32.mxu0 %v297
        %1072 = vmatmul.mubr.f32.gmra.mrb[0].mxu0 %v295
        %v1073 = vpop.f32.mrb[0].mxu0
        %v1074 = vadd.f32 0.0, %v1073
        %v1075 = vpop.f32.mrb[0].mxu0
        %v1076 = vadd.f32 0.0, %v1075
        %1077 = vmatprep.mubr.f32.mxu0 %v303
        %1078 = vmatmul.mubr.f32.gmra.mrb[0].mxu0 %v301
        %v1079 = vpop.f32.mrb[0].mxu0
        %v1080 = vadd.f32 0.0, %v1079
        %v1081 = vpop.f32.mrb[0].mxu0
        %v1082 = vadd.f32 0.0, %v1081
        %1083 = vmatprep.mubr.f32.mxu0 %v309
        %1084 = vmatmul.mubr.f32.gmra.mrb[0].mxu0 %v307
        %v1085 = vpop.f32.mrb[0].mxu0
        %v1086 = vadd.f32 0.0, %v1085
        %v1087 = vpop.f32.mrb[0].mxu0
        %v1088 = vadd.f32 0.0, %v1087
        %1089 = vdwg.mxu0
        %v1090 = vrcp.pop %v1086
        %v1091 = vrcp.pop %v1088
        %v1092 = vlaneseq
        %v1093 = vshrl.u32 %v1092, 7
        %v1094 = vsub.s32 0, %v1093
        %v1095 = vrot.slane %v1090, %v1094
        %v1096 = vlaneseq
        %v1097 = vshrl.u32 %v1096, 7
        %v1098 = vsub.s32 0, %v1097
        %v1099 = vrot.slane %v1091, %v1098
        %v1100 = vmul.f32 %v1062, %v1095
        %v1101 = vmul.f32 %v1064, %v1099
        %v1102 = vmul.f32 %v1068, %v1095
        %v1103 = vmul.f32 %v1070, %v1099
        %v1104 = vmul.f32 %v1074, %v1095
        %v1105 = vmul.f32 %v1076, %v1099
        %v1106 = vmul.f32 %v1080, %v1095
        %v1107 = vmul.f32 %v1082, %v1099
        %v1108 = vadd.f32 %v1100, %v172
        %v1109 = vadd.f32 %v1101, %v173
        %v1110 = vadd.f32 %v1102, %v174
        %v1111 = vadd.f32 %v1103, %v175
        %v1112 = vadd.f32 %v1104, %v176
        %v1113 = vadd.f32 %v1105, %v177
        %v1114 = vadd.f32 %v1106, %v178
        %v1115 = vadd.f32 %v1107, %v179
        %1116 = vst [vmem:[%s162] sm:$0xff] %v1108
        %1117 = vst [vmem:[%s162 + $0x8] sm:$0xff] %v1109
        %1118 = vst [vmem:[%s162 + $0x10] sm:$0xff] %v1110
        %1119 = vst [vmem:[%s162 + $0x18] sm:$0xff] %v1111
        %1120 = vst [vmem:[%s162 + $0x20] sm:$0xff] %v1112
        %1121 = vst [vmem:[%s162 + $0x28] sm:$0xff] %v1113
        %1122 = vst [vmem:[%s162 + $0x30] sm:$0xff] %v1114
        %1123 = vst [vmem:[%s162 + $0x38] sm:$0xff] %v1115
        %s1124 = scalar_lea.vmem %s142, 80 [#allocation2]
        %v1125 = vld [vmem:[%s1124] sm:$0xff]
        %v1126 = vld [vmem:[%s1124 + $0x8] sm:$0xff]
        %v1127 = vld [vmem:[%s1124 + $0x10] sm:$0xff]
        %v1128 = vld [vmem:[%s1124 + $0x18] sm:$0xff]
        %v1129 = vld [vmem:[%s1124 + $0x20] sm:$0xff]
        %v1130 = vld [vmem:[%s1124 + $0x28] sm:$0xff]
        %v1131 = vld [vmem:[%s1124 + $0x30] sm:$0xff]
        %v1132 = vld [vmem:[%s1124 + $0x38] sm:$0xff]
        %v1133 = vld [vmem:[%s1124 + $0x40] sm:$0xff]
        %v1134 = vld [vmem:[%s1124 + $0x48] sm:$0xff]
        %1135 = vmatprep.subr.mxu0 %v1126
        %1136 = vmatpush1.msra.mxu0 %v1125
        %1137 = vmatprep.subr.mxu0 %v1128
        %1138 = vmatpush1.msra.mxu0 %v1127
        %1139 = vmatprep.subr.mxu0 %v1130
        %1140 = vmatpush1.msra.mxu0 %v1129
        %1141 = vmatprep.subr.mxu0 %v1132
        %1142 = vmatpush1.msra.mxu0 %v1131
        %1143 = vmatprep.subr.mxu0 %v1134
        %1144 = vmatpush1.msra.mxu0 %v1133
        %1145 = vmatprep.subr.mxu0 0.0
        %1146 = vmatpush1.msra.mxu0 0.0
        %1147 = vmatprep.subr.mxu0 0.0
        %1148 = vmatpush1.msra.mxu0 0.0
        %1149 = vmatprep.subr.mxu0 0.0
        %1150 = vmatpush1.msra.mxu0 0.0
        %1151 = vmatprep.subr.mxu0 0.0
        %1152 = vmatpush1.msra.mxu0 0.0
        %1153 = vmatprep.subr.mxu0 0.0
        %1154 = vmatpush1.msra.mxu0 0.0
        %1155 = vmatprep.subr.mxu0 0.0
        %1156 = vmatpush1.msra.mxu0 0.0
        %1157 = vmatprep.subr.mxu0 0.0
        %1158 = vmatpush1.msra.mxu0 0.0
        %1159 = vmatprep.subr.mxu0 0.0
        %1160 = vmatpush1.msra.mxu0 0.0
        %1161 = vmatprep.subr.mxu0 0.0
        %1162 = vmatpush1.msra.mxu0 0.0
        %1163 = vmatprep.subr.mxu0 0.0
        %1164 = vmatpush1.msra.mxu0 0.0
        %1165 = vmatprep.subr.mxu0 0.0
        %1166 = vmatpush1.msra.mxu0 0.0
        %1167 = vmatprep.subr.mxu0 0.0
        %1168 = vmatpush1.msra.mxu0 0.0
        %1169 = vmatprep.subr.mxu0 0.0
        %1170 = vmatpush1.msra.mxu0 0.0
        %1171 = vmatprep.subr.mxu0 0.0
        %1172 = vmatpush1.msra.mxu0 0.0
        %1173 = vmatprep.subr.mxu0 0.0
        %1174 = vmatpush1.msra.mxu0 0.0
        %1175 = vmatprep.subr.mxu0 0.0
        %1176 = vmatpush1.msra.mxu0 0.0
        %1177 = vmatprep.subr.mxu0 0.0
        %1178 = vmatpush1.msra.mxu0 0.0
        %1179 = vmatprep.subr.mxu0 0.0
        %1180 = vmatpush1.msra.mxu0 0.0
        %1181 = vmatprep.subr.mxu0 0.0
        %1182 = vmatpush1.msra.mxu0 0.0
        %1183 = vmatprep.subr.mxu0 0.0
        %1184 = vmatpush1.msra.mxu0 0.0
        %1185 = vmatprep.subr.mxu0 0.0
        %1186 = vmatpush1.msra.mxu0 0.0
        %1187 = vmatprep.subr.mxu0 0.0
        %1188 = vmatpush1.msra.mxu0 0.0
        %1189 = vmatprep.subr.mxu0 0.0
        %1190 = vmatpush1.msra.mxu0 0.0
        %1191 = vmatprep.subr.mxu0 0.0
        %1192 = vmatpush1.msra.mxu0 0.0
        %1193 = vmatprep.subr.mxu0 0.0
        %1194 = vmatpush1.msra.mxu0 0.0
        %1195 = vmatprep.subr.mxu0 0.0
        %1196 = vmatpush1.msra.mxu0 0.0
        %1197 = vmatprep.subr.mxu0 0.0
        %1198 = vmatpush1.msra.mxu0 0.0
        %1199 = vmatprep.mubr.f32.mxu0 0.0
        %1200 = vmatmul.mubr.f32.gmra.mrb[0].mxu0 %v184
        %v1201 = vpop.f32.mrb[0].mxu0
        %v1202 = vadd.f32 0.0, %v1201
        %v1203 = vpop.f32.mrb[0].mxu0
        %v1204 = vadd.f32 0.0, %v1203
        %1205 = vmatprep.mubr.f32.mxu0 0.0
        %1206 = vmatmul.mubr.f32.gmra.mrb[0].mxu0 %v187
        %v1207 = vpop.f32.mrb[0].mxu0
        %v1208 = vadd.f32 0.0, %v1207
        %v1209 = vpop.f32.mrb[0].mxu0
        %v1210 = vadd.f32 0.0, %v1209
        %1211 = vmatprep.mubr.f32.mxu0 0.0
        %1212 = vmatmul.mubr.f32.gmra.mrb[0].mxu0 %v190
        %v1213 = vpop.f32.mrb[0].mxu0
        %v1214 = vadd.f32 0.0, %v1213
        %v1215 = vpop.f32.mrb[0].mxu0
        %v1216 = vadd.f32 0.0, %v1215
        %1217 = vmatprep.mubr.f32.mxu0 0.0
        %1218 = vmatmul.mubr.f32.gmra.mrb[0].mxu0 %v193
        %v1219 = vpop.f32.mrb[0].mxu0
        %v1220 = vadd.f32 0.0, %v1219
        %v1221 = vpop.f32.mrb[0].mxu0
        %v1222 = vadd.f32 0.0, %v1221
        %1223 = vmatprep.mubr.f32.mxu0 0.0
        %1224 = vmatmul.mubr.f32.gmra.mrb[0].mxu0 %v196
        %v1225 = vpop.f32.mrb[0].mxu0
        %v1226 = vadd.f32 0.0, %v1225
        %v1227 = vpop.f32.mrb[0].mxu0
        %v1228 = vadd.f32 0.0, %v1227
        %1229 = vmatprep.mubr.f32.mxu0 0.0
        %1230 = vmatmul.mubr.f32.gmra.mrb[0].mxu0 %v199
        %v1231 = vpop.f32.mrb[0].mxu0
        %v1232 = vadd.f32 0.0, %v1231
        %v1233 = vpop.f32.mrb[0].mxu0
        %v1234 = vadd.f32 0.0, %v1233
        %1235 = vmatprep.mubr.f32.mxu0 0.0
        %1236 = vmatmul.mubr.f32.gmra.mrb[0].mxu0 %v202
        %v1237 = vpop.f32.mrb[0].mxu0
        %v1238 = vadd.f32 0.0, %v1237
        %v1239 = vpop.f32.mrb[0].mxu0
        %v1240 = vadd.f32 0.0, %v1239
        %1241 = vdwg.mxu0
        %1242 = vxpose.xlu0.b32.start [1/16] %v1208, 128
        %1243 = vxpose.xlu0.b32.cont [2/16] 0.0, 128
        %1244 = vxpose.xlu0.b32.cont [3/16] 0.0, 128
        %1245 = vxpose.xlu0.b32.cont [4/16] 0.0, 128
        %1246 = vxpose.xlu0.b32.cont [5/16] 0.0, 128
        %1247 = vxpose.xlu0.b32.cont [6/16] 0.0, 128
        %1248 = vxpose.xlu0.b32.cont [7/16] 0.0, 128
        %1249 = vxpose.xlu0.b32.cont [8/16] 0.0, 128
        %1250 = vxpose.xlu0.b32.cont [9/16] 0.0, 128
        %1251 = vxpose.xlu0.b32.cont [10/16] 0.0, 128
        %1252 = vxpose.xlu0.b32.cont [11/16] 0.0, 128
        %1253 = vxpose.xlu0.b32.cont [12/16] 0.0, 128
        %1254 = vxpose.xlu0.b32.cont [13/16] 0.0, 128
        %1255 = vxpose.xlu0.b32.cont [14/16] 0.0, 128
        %1256 = vxpose.xlu0.b32.cont [15/16] 0.0, 128
        %1257 = vxpose.xlu0.b32.end [16/16] 0.0, 128
        %v1258 = vpop.trf.xlu0
        %v1259 = vpop.trf.xlu0
        %v1260 = vpop.trf.xlu0
        %v1261 = vpop.trf.xlu0
        %v1262 = vpop.trf.xlu0
        %v1263 = vpop.trf.xlu0
        %v1264 = vpop.trf.xlu0
        %v1265 = vpop.trf.xlu0
        %v1266 = vpop.trf.xlu0
        %v1267 = vpop.trf.xlu0
        %v1268 = vpop.trf.xlu0
        %v1269 = vpop.trf.xlu0
        %v1270 = vpop.trf.xlu0
        %v1271 = vpop.trf.xlu0
        %v1272 = vpop.trf.xlu0
        %v1273 = vpop.trf.xlu0
        %1274 = vxpose.xlu0.b32.start [1/16] %v1210, 128
        %1275 = vxpose.xlu0.b32.cont [2/16] 0.0, 128
        %1276 = vxpose.xlu0.b32.cont [3/16] 0.0, 128
        %1277 = vxpose.xlu0.b32.cont [4/16] 0.0, 128
        %1278 = vxpose.xlu0.b32.cont [5/16] 0.0, 128
        %1279 = vxpose.xlu0.b32.cont [6/16] 0.0, 128
        %1280 = vxpose.xlu0.b32.cont [7/16] 0.0, 128
        %1281 = vxpose.xlu0.b32.cont [8/16] 0.0, 128
        %1282 = vxpose.xlu0.b32.cont [9/16] 0.0, 128
        %1283 = vxpose.xlu0.b32.cont [10/16] 0.0, 128
        %1284 = vxpose.xlu0.b32.cont [11/16] 0.0, 128
        %1285 = vxpose.xlu0.b32.cont [12/16] 0.0, 128
        %1286 = vxpose.xlu0.b32.cont [13/16] 0.0, 128
        %1287 = vxpose.xlu0.b32.cont [14/16] 0.0, 128
        %1288 = vxpose.xlu0.b32.cont [15/16] 0.0, 128
        %1289 = vxpose.xlu0.b32.end [16/16] 0.0, 128
        %v1290 = vpop.trf.xlu0
        %v1291 = vpop.trf.xlu0
        %v1292 = vpop.trf.xlu0
        %v1293 = vpop.trf.xlu0
        %v1294 = vpop.trf.xlu0
        %v1295 = vpop.trf.xlu0
        %v1296 = vpop.trf.xlu0
        %v1297 = vpop.trf.xlu0
        %v1298 = vpop.trf.xlu0
        %v1299 = vpop.trf.xlu0
        %v1300 = vpop.trf.xlu0
        %v1301 = vpop.trf.xlu0
        %v1302 = vpop.trf.xlu0
        %v1303 = vpop.trf.xlu0
        %v1304 = vpop.trf.xlu0
        %v1305 = vpop.trf.xlu0
        %v1307 = vsel %vm375, %v1258, 0
        %v1310 = vsel %vm375, %v1259, 0
        %v1313 = vsel %vm375, %v1260, 0
        %v1316 = vsel %vm375, %v1261, 0
        %v1319 = vsel %vm375, %v1262, 0
        %v1322 = vsel %vm375, %v1263, 0
        %v1325 = vsel %vm375, %v1264, 0
        %v1328 = vsel %vm375, %v1265, 0
        %v1331 = vsel %vm375, %v1266, 0
        %v1334 = vsel %vm375, %v1267, 0
        %v1337 = vsel %vm375, %v1268, 0
        %v1340 = vsel %vm375, %v1269, 0
        %v1343 = vsel %vm375, %v1270, 0
        %v1346 = vsel %vm375, %v1271, 0
        %v1349 = vsel %vm375, %v1272, 0
        %v1352 = vsel %vm375, %v1273, 0
        %v1355 = vsel %vm375, %v1290, 0
        %v1358 = vsel %vm375, %v1291, 0
        %v1361 = vsel %vm375, %v1292, 0
        %v1364 = vsel %vm375, %v1293, 0
        %v1367 = vsel %vm375, %v1294, 0
        %v1370 = vsel %vm375, %v1295, 0
        %v1373 = vsel %vm375, %v1296, 0
        %v1376 = vsel %vm375, %v1297, 0
        %v1379 = vsel %vm375, %v1298, 0
        %v1382 = vsel %vm375, %v1299, 0
        %v1385 = vsel %vm375, %v1300, 0
        %v1388 = vsel %vm375, %v1301, 0
        %v1391 = vsel %vm375, %v1302, 0
        %v1394 = vsel %vm375, %v1303, 0
        %v1397 = vsel %vm375, %v1304, 0
        %v1400 = vsel %vm375, %v1305, 0
        %1402 = vmatprep.subr.mxu0 %v1204
        %1403 = vmatpush1.msra.mxu0 %v1202
        %1404 = vmatprep.subr.mxu0 0.0
        %1405 = vmatpush1.msra.mxu0 0.0
        %1406 = vmatprep.subr.mxu0 0.0
        %1407 = vmatpush1.msra.mxu0 0.0
        %1408 = vmatprep.subr.mxu0 0.0
        %1409 = vmatpush1.msra.mxu0 0.0
        %1410 = vmatprep.subr.mxu0 0.0
        %1411 = vmatpush1.msra.mxu0 0.0
        %1412 = vmatprep.subr.mxu0 0.0
        %1413 = vmatpush1.msra.mxu0 0.0
        %1414 = vmatprep.subr.mxu0 0.0
        %1415 = vmatpush1.msra.mxu0 0.0
        %1416 = vmatprep.subr.mxu0 0.0
        %1417 = vmatpush1.msra.mxu0 0.0
        %1418 = vmatprep.subr.mxu0 0.0
        %1419 = vmatpush1.msra.mxu0 0.0
        %1420 = vmatprep.subr.mxu0 0.0
        %1421 = vmatpush1.msra.mxu0 0.0
        %1422 = vmatprep.subr.mxu0 0.0
        %1423 = vmatpush1.msra.mxu0 0.0
        %1424 = vmatprep.subr.mxu0 0.0
        %1425 = vmatpush1.msra.mxu0 0.0
        %1426 = vmatprep.subr.mxu0 0.0
        %1427 = vmatpush1.msra.mxu0 0.0
        %1428 = vmatprep.subr.mxu0 0.0
        %1429 = vmatpush1.msra.mxu0 0.0
        %1430 = vmatprep.subr.mxu0 0.0
        %1431 = vmatpush1.msra.mxu0 0.0
        %1432 = vmatprep.subr.mxu0 0.0
        %1433 = vmatpush1.msra.mxu0 0.0
        %1434 = vmatprep.subr.mxu0 0.0
        %1435 = vmatpush1.msra.mxu0 0.0
        %1436 = vmatprep.subr.mxu0 0.0
        %1437 = vmatpush1.msra.mxu0 0.0
        %1438 = vmatprep.subr.mxu0 0.0
        %1439 = vmatpush1.msra.mxu0 0.0
        %1440 = vmatprep.subr.mxu0 0.0
        %1441 = vmatpush1.msra.mxu0 0.0
        %1442 = vmatprep.subr.mxu0 0.0
        %1443 = vmatpush1.msra.mxu0 0.0
        %1444 = vmatprep.subr.mxu0 0.0
        %1445 = vmatpush1.msra.mxu0 0.0
        %1446 = vmatprep.subr.mxu0 0.0
        %1447 = vmatpush1.msra.mxu0 0.0
        %1448 = vmatprep.subr.mxu0 0.0
        %1449 = vmatpush1.msra.mxu0 0.0
        %1450 = vmatprep.subr.mxu0 0.0
        %1451 = vmatpush1.msra.mxu0 0.0
        %1452 = vmatprep.subr.mxu0 0.0
        %1453 = vmatpush1.msra.mxu0 0.0
        %1454 = vmatprep.subr.mxu0 0.0
        %1455 = vmatpush1.msra.mxu0 0.0
        %1456 = vmatprep.subr.mxu0 0.0
        %1457 = vmatpush1.msra.mxu0 0.0
        %1458 = vmatprep.subr.mxu0 0.0
        %1459 = vmatpush1.msra.mxu0 0.0
        %1460 = vmatprep.subr.mxu0 0.0
        %1461 = vmatpush1.msra.mxu0 0.0
        %1462 = vmatprep.subr.mxu0 0.0
        %1463 = vmatpush1.msra.mxu0 0.0
        %1464 = vmatprep.subr.mxu0 0.0
        %1465 = vmatpush1.msra.mxu0 0.0
        %1466 = vmatprep.mubr.f32.mxu0 0.0
        %1467 = vmatmul.mubr.f32.gmra.mrb[0].mxu0 %v1307
        %v1468 = vpop.f32.mrb[0].mxu0
        %v1469 = vadd.f32 0.0, %v1468
        %v1470 = vpop.f32.mrb[0].mxu0
        %v1471 = vadd.f32 0.0, %v1470
        %1472 = vmatprep.mubr.f32.mxu0 0.0
        %1473 = vmatmul.mubr.f32.gmra.mrb[0].mxu0 %v1310
        %v1474 = vpop.f32.mrb[0].mxu0
        %v1475 = vadd.f32 0.0, %v1474
        %v1476 = vpop.f32.mrb[0].mxu0
        %v1477 = vadd.f32 0.0, %v1476
        %1478 = vmatprep.mubr.f32.mxu0 0.0
        %1479 = vmatmul.mubr.f32.gmra.mrb[0].mxu0 %v1313
        %v1480 = vpop.f32.mrb[0].mxu0
        %v1481 = vadd.f32 0.0, %v1480
        %v1482 = vpop.f32.mrb[0].mxu0
        %v1483 = vadd.f32 0.0, %v1482
        %1484 = vmatprep.mubr.f32.mxu0 0.0
        %1485 = vmatmul.mubr.f32.gmra.mrb[0].mxu0 %v1316
        %v1486 = vpop.f32.mrb[0].mxu0
        %v1487 = vadd.f32 0.0, %v1486
        %v1488 = vpop.f32.mrb[0].mxu0
        %v1489 = vadd.f32 0.0, %v1488
        %1490 = vmatprep.mubr.f32.mxu0 0.0
        %1491 = vmatmul.mubr.f32.gmra.mrb[0].mxu0 %v1319
        %v1492 = vpop.f32.mrb[0].mxu0
        %v1493 = vadd.f32 0.0, %v1492
        %v1494 = vpop.f32.mrb[0].mxu0
        %v1495 = vadd.f32 0.0, %v1494
        %1496 = vmatprep.mubr.f32.mxu0 0.0
        %1497 = vmatmul.mubr.f32.gmra.mrb[0].mxu0 %v1322
        %v1498 = vpop.f32.mrb[0].mxu0
        %v1499 = vadd.f32 0.0, %v1498
        %v1500 = vpop.f32.mrb[0].mxu0
        %v1501 = vadd.f32 0.0, %v1500
        %1502 = vmatprep.mubr.f32.mxu0 0.0
        %1503 = vmatmul.mubr.f32.gmra.mrb[0].mxu0 %v1325
        %v1504 = vpop.f32.mrb[0].mxu0
        %v1505 = vadd.f32 0.0, %v1504
        %v1506 = vpop.f32.mrb[0].mxu0
        %v1507 = vadd.f32 0.0, %v1506
        %1508 = vmatprep.mubr.f32.mxu0 0.0
        %1509 = vmatmul.mubr.f32.gmra.mrb[0].mxu0 %v1328
        %v1510 = vpop.f32.mrb[0].mxu0
        %v1511 = vadd.f32 0.0, %v1510
        %v1512 = vpop.f32.mrb[0].mxu0
        %v1513 = vadd.f32 0.0, %v1512
        %1514 = vmatprep.mubr.f32.mxu0 0.0
        %1515 = vmatmul.mubr.f32.gmra.mrb[0].mxu0 %v1331
        %v1516 = vpop.f32.mrb[0].mxu0
        %v1517 = vadd.f32 0.0, %v1516
        %v1518 = vpop.f32.mrb[0].mxu0
        %v1519 = vadd.f32 0.0, %v1518
        %1520 = vmatprep.mubr.f32.mxu0 0.0
        %1521 = vmatmul.mubr.f32.gmra.mrb[0].mxu0 %v1334
        %v1522 = vpop.f32.mrb[0].mxu0
        %v1523 = vadd.f32 0.0, %v1522
        %v1524 = vpop.f32.mrb[0].mxu0
        %v1525 = vadd.f32 0.0, %v1524
        %1526 = vmatprep.mubr.f32.mxu0 0.0
        %1527 = vmatmul.mubr.f32.gmra.mrb[0].mxu0 %v1337
        %v1528 = vpop.f32.mrb[0].mxu0
        %v1529 = vadd.f32 0.0, %v1528
        %v1530 = vpop.f32.mrb[0].mxu0
        %v1531 = vadd.f32 0.0, %v1530
        %1532 = vmatprep.mubr.f32.mxu0 0.0
        %1533 = vmatmul.mubr.f32.gmra.mrb[0].mxu0 %v1340
        %v1534 = vpop.f32.mrb[0].mxu0
        %v1535 = vadd.f32 0.0, %v1534
        %v1536 = vpop.f32.mrb[0].mxu0
        %v1537 = vadd.f32 0.0, %v1536
        %1538 = vmatprep.mubr.f32.mxu0 0.0
        %1539 = vmatmul.mubr.f32.gmra.mrb[0].mxu0 %v1343
        %v1540 = vpop.f32.mrb[0].mxu0
        %v1541 = vadd.f32 0.0, %v1540
        %v1542 = vpop.f32.mrb[0].mxu0
        %v1543 = vadd.f32 0.0, %v1542
        %1544 = vmatprep.mubr.f32.mxu0 0.0
        %1545 = vmatmul.mubr.f32.gmra.mrb[0].mxu0 %v1346
        %v1546 = vpop.f32.mrb[0].mxu0
        %v1547 = vadd.f32 0.0, %v1546
        %v1548 = vpop.f32.mrb[0].mxu0
        %v1549 = vadd.f32 0.0, %v1548
        %1550 = vmatprep.mubr.f32.mxu0 0.0
        %1551 = vmatmul.mubr.f32.gmra.mrb[0].mxu0 %v1349
        %v1552 = vpop.f32.mrb[0].mxu0
        %v1553 = vadd.f32 0.0, %v1552
        %v1554 = vpop.f32.mrb[0].mxu0
        %v1555 = vadd.f32 0.0, %v1554
        %1556 = vmatprep.mubr.f32.mxu0 0.0
        %1557 = vmatmul.mubr.f32.gmra.mrb[0].mxu0 %v1352
        %v1558 = vpop.f32.mrb[0].mxu0
        %v1559 = vadd.f32 0.0, %v1558
        %v1560 = vpop.f32.mrb[0].mxu0
        %v1561 = vadd.f32 0.0, %v1560
        %1562 = vmatprep.mubr.f32.mxu0 0.0
        %1563 = vmatmul.mubr.f32.gmra.mrb[0].mxu0 %v1355
        %v1564 = vpop.f32.mrb[0].mxu0
        %v1565 = vadd.f32 0.0, %v1564
        %v1566 = vpop.f32.mrb[0].mxu0
        %v1567 = vadd.f32 0.0, %v1566
        %1568 = vmatprep.mubr.f32.mxu0 0.0
        %1569 = vmatmul.mubr.f32.gmra.mrb[0].mxu0 %v1358
        %v1570 = vpop.f32.mrb[0].mxu0
        %v1571 = vadd.f32 0.0, %v1570
        %v1572 = vpop.f32.mrb[0].mxu0
        %v1573 = vadd.f32 0.0, %v1572
        %1574 = vmatprep.mubr.f32.mxu0 0.0
        %1575 = vmatmul.mubr.f32.gmra.mrb[0].mxu0 %v1361
        %v1576 = vpop.f32.mrb[0].mxu0
        %v1577 = vadd.f32 0.0, %v1576
        %v1578 = vpop.f32.mrb[0].mxu0
        %v1579 = vadd.f32 0.0, %v1578
        %1580 = vmatprep.mubr.f32.mxu0 0.0
        %1581 = vmatmul.mubr.f32.gmra.mrb[0].mxu0 %v1364
        %v1582 = vpop.f32.mrb[0].mxu0
        %v1583 = vadd.f32 0.0, %v1582
        %v1584 = vpop.f32.mrb[0].mxu0
        %v1585 = vadd.f32 0.0, %v1584
        %1586 = vmatprep.mubr.f32.mxu0 0.0
        %1587 = vmatmul.mubr.f32.gmra.mrb[0].mxu0 %v1367
        %v1588 = vpop.f32.mrb[0].mxu0
        %v1589 = vadd.f32 0.0, %v1588
        %v1590 = vpop.f32.mrb[0].mxu0
        %v1591 = vadd.f32 0.0, %v1590
        %1592 = vmatprep.mubr.f32.mxu0 0.0
        %1593 = vmatmul.mubr.f32.gmra.mrb[0].mxu0 %v1370
        %v1594 = vpop.f32.mrb[0].mxu0
        %v1595 = vadd.f32 0.0, %v1594
        %v1596 = vpop.f32.mrb[0].mxu0
        %v1597 = vadd.f32 0.0, %v1596
        %1598 = vmatprep.mubr.f32.mxu0 0.0
        %1599 = vmatmul.mubr.f32.gmra.mrb[0].mxu0 %v1373
        %v1600 = vpop.f32.mrb[0].mxu0
        %v1601 = vadd.f32 0.0, %v1600
        %v1602 = vpop.f32.mrb[0].mxu0
        %v1603 = vadd.f32 0.0, %v1602
        %1604 = vmatprep.mubr.f32.mxu0 0.0
        %1605 = vmatmul.mubr.f32.gmra.mrb[0].mxu0 %v1376
        %v1606 = vpop.f32.mrb[0].mxu0
        %v1607 = vadd.f32 0.0, %v1606
        %v1608 = vpop.f32.mrb[0].mxu0
        %v1609 = vadd.f32 0.0, %v1608
        %1610 = vmatprep.mubr.f32.mxu0 0.0
        %1611 = vmatmul.mubr.f32.gmra.mrb[0].mxu0 %v1379
        %v1612 = vpop.f32.mrb[0].mxu0
        %v1613 = vadd.f32 0.0, %v1612
        %v1614 = vpop.f32.mrb[0].mxu0
        %v1615 = vadd.f32 0.0, %v1614
        %1616 = vmatprep.mubr.f32.mxu0 0.0
        %1617 = vmatmul.mubr.f32.gmra.mrb[0].mxu0 %v1382
        %v1618 = vpop.f32.mrb[0].mxu0
        %v1619 = vadd.f32 0.0, %v1618
        %v1620 = vpop.f32.mrb[0].mxu0
        %v1621 = vadd.f32 0.0, %v1620
        %1622 = vmatprep.mubr.f32.mxu0 0.0
        %1623 = vmatmul.mubr.f32.gmra.mrb[0].mxu0 %v1385
        %v1624 = vpop.f32.mrb[0].mxu0
        %v1625 = vadd.f32 0.0, %v1624
        %v1626 = vpop.f32.mrb[0].mxu0
        %v1627 = vadd.f32 0.0, %v1626
        %1628 = vmatprep.mubr.f32.mxu0 0.0
        %1629 = vmatmul.mubr.f32.gmra.mrb[0].mxu0 %v1388
        %v1630 = vpop.f32.mrb[0].mxu0
        %v1631 = vadd.f32 0.0, %v1630
        %v1632 = vpop.f32.mrb[0].mxu0
        %v1633 = vadd.f32 0.0, %v1632
        %1634 = vmatprep.mubr.f32.mxu0 0.0
        %1635 = vmatmul.mubr.f32.gmra.mrb[0].mxu0 %v1391
        %v1636 = vpop.f32.mrb[0].mxu0
        %v1637 = vadd.f32 0.0, %v1636
        %v1638 = vpop.f32.mrb[0].mxu0
        %v1639 = vadd.f32 0.0, %v1638
        %1640 = vmatprep.mubr.f32.mxu0 0.0
        %1641 = vmatmul.mubr.f32.gmra.mrb[0].mxu0 %v1394
        %v1642 = vpop.f32.mrb[0].mxu0
        %v1643 = vadd.f32 0.0, %v1642
        %v1644 = vpop.f32.mrb[0].mxu0
        %v1645 = vadd.f32 0.0, %v1644
        %1646 = vmatprep.mubr.f32.mxu0 0.0
        %1647 = vmatmul.mubr.f32.gmra.mrb[0].mxu0 %v1397
        %v1648 = vpop.f32.mrb[0].mxu0
        %v1649 = vadd.f32 0.0, %v1648
        %v1650 = vpop.f32.mrb[0].mxu0
        %v1651 = vadd.f32 0.0, %v1650
        %1652 = vmatprep.mubr.f32.mxu0 0.0
        %1653 = vmatmul.mubr.f32.gmra.mrb[0].mxu0 %v1400
        %v1654 = vpop.f32.mrb[0].mxu0
        %v1655 = vadd.f32 0.0, %v1654
        %v1656 = vpop.f32.mrb[0].mxu0
        %v1657 = vadd.f32 0.0, %v1656
        %1658 = vdwg.mxu0
        %v1659 = vmax.f32 %v1469, %v1481
        %v1660 = vmax.f32 %v1475, %v1487
        %v1661 = vmax.f32 %v1659, %v1493
        %v1662 = vmax.f32 %v1660, %v1499
        %v1663 = vmax.f32 %v1661, %v1505
        %v1664 = vmax.f32 %v1662, %v1511
        %v1665 = vmax.f32 %v1663, %v1517
        %v1666 = vmax.f32 %v1664, %v1523
        %v1667 = vmax.f32 %v1665, %v1529
        %v1668 = vmax.f32 %v1666, %v1535
        %v1669 = vmax.f32 %v1667, %v1541
        %v1670 = vmax.f32 %v1668, %v1547
        %v1671 = vmax.f32 %v1669, %v1553
        %v1672 = vmax.f32 %v1670, %v1559
        %v1673 = vmax.f32 %v1671, %v1565
        %v1674 = vmax.f32 %v1672, %v1571
        %v1675 = vmax.f32 %v1673, %v1577
        %v1676 = vmax.f32 %v1674, %v1583
        %v1677 = vmax.f32 %v1675, %v1589
        %v1678 = vmax.f32 %v1676, %v1595
        %v1679 = vmax.f32 %v1677, %v1601
        %v1680 = vmax.f32 %v1678, %v1607
        %v1681 = vmax.f32 %v1679, %v1613
        %v1682 = vmax.f32 %v1680, %v1619
        %v1683 = vmax.f32 %v1681, %v1625
        %v1684 = vmax.f32 %v1682, %v1631
        %v1685 = vmax.f32 %v1683, %v1637
        %v1686 = vmax.f32 %v1684, %v1643
        %v1687 = vmax.f32 %v1685, %v1649
        %v1688 = vmax.f32 %v1686, %v1655
        %v1689 = vmax.f32 %v1687, %v1688
        %v1690 = vrot.slane %v1689, 4
        %v1691 = vmax.f32 %v1689, %v1690
        %v1692 = vrot.slane %v1691, 2
        %v1693 = vmax.f32 %v1691, %v1692
        %v1694 = vrot.slane %v1693, 1
        %v1695 = vmax.f32 %v1693, %v1694
        %v1696 = vmax.f32 %v1471, %v1483
        %v1697 = vmax.f32 %v1477, %v1489
        %v1698 = vmax.f32 %v1696, %v1495
        %v1699 = vmax.f32 %v1697, %v1501
        %v1700 = vmax.f32 %v1698, %v1507
        %v1701 = vmax.f32 %v1699, %v1513
        %v1702 = vmax.f32 %v1700, %v1519
        %v1703 = vmax.f32 %v1701, %v1525
        %v1704 = vmax.f32 %v1702, %v1531
        %v1705 = vmax.f32 %v1703, %v1537
        %v1706 = vmax.f32 %v1704, %v1543
        %v1707 = vmax.f32 %v1705, %v1549
        %v1708 = vmax.f32 %v1706, %v1555
        %v1709 = vmax.f32 %v1707, %v1561
        %v1710 = vmax.f32 %v1708, %v1567
        %v1711 = vmax.f32 %v1709, %v1573
        %v1712 = vmax.f32 %v1710, %v1579
        %v1713 = vmax.f32 %v1711, %v1585
        %v1714 = vmax.f32 %v1712, %v1591
        %v1715 = vmax.f32 %v1713, %v1597
        %v1716 = vmax.f32 %v1714, %v1603
        %v1717 = vmax.f32 %v1715, %v1609
        %v1718 = vmax.f32 %v1716, %v1615
        %v1719 = vmax.f32 %v1717, %v1621
        %v1720 = vmax.f32 %v1718, %v1627
        %v1721 = vmax.f32 %v1719, %v1633
        %v1722 = vmax.f32 %v1720, %v1639
        %v1723 = vmax.f32 %v1721, %v1645
        %v1724 = vmax.f32 %v1722, %v1651
        %v1725 = vmax.f32 %v1723, %v1657
        %v1726 = vmax.f32 %v1724, %v1725
        %v1727 = vrot.slane %v1726, 4
        %v1728 = vmax.f32 %v1726, %v1727
        %v1729 = vrot.slane %v1728, 2
        %v1730 = vmax.f32 %v1728, %v1729
        %v1731 = vrot.slane %v1730, 1
        %v1732 = vmax.f32 %v1730, %v1731
        %v1733 = vsub.f32 %v1469, %v1695
        %v1734 = vsub.f32 %v1471, %v1732
        %v1735 = vsub.f32 %v1475, %v1695
        %v1736 = vsub.f32 %v1477, %v1732
        %v1737 = vsub.f32 %v1481, %v1695
        %v1738 = vsub.f32 %v1483, %v1732
        %v1739 = vsub.f32 %v1487, %v1695
        %v1740 = vsub.f32 %v1489, %v1732
        %v1741 = vsub.f32 %v1493, %v1695
        %v1742 = vsub.f32 %v1495, %v1732
        %v1743 = vsub.f32 %v1499, %v1695
        %v1744 = vsub.f32 %v1501, %v1732
        %v1745 = vsub.f32 %v1505, %v1695
        %v1746 = vsub.f32 %v1507, %v1732
        %v1747 = vsub.f32 %v1511, %v1695
        %v1748 = vsub.f32 %v1513, %v1732
        %v1749 = vsub.f32 %v1517, %v1695
        %v1750 = vsub.f32 %v1519, %v1732
        %v1751 = vsub.f32 %v1523, %v1695
        %v1752 = vsub.f32 %v1525, %v1732
        %v1753 = vsub.f32 %v1529, %v1695
        %v1754 = vsub.f32 %v1531, %v1732
        %v1755 = vsub.f32 %v1535, %v1695
        %v1756 = vsub.f32 %v1537, %v1732
        %v1757 = vsub.f32 %v1541, %v1695
        %v1758 = vsub.f32 %v1543, %v1732
        %v1759 = vsub.f32 %v1547, %v1695
        %v1760 = vsub.f32 %v1549, %v1732
        %v1761 = vsub.f32 %v1553, %v1695
        %v1762 = vsub.f32 %v1555, %v1732
        %v1763 = vsub.f32 %v1559, %v1695
        %v1764 = vsub.f32 %v1561, %v1732
        %v1765 = vsub.f32 %v1565, %v1695
        %v1766 = vsub.f32 %v1567, %v1732
        %v1767 = vsub.f32 %v1571, %v1695
        %v1768 = vsub.f32 %v1573, %v1732
        %v1769 = vsub.f32 %v1577, %v1695
        %v1770 = vsub.f32 %v1579, %v1732
        %v1771 = vsub.f32 %v1583, %v1695
        %v1772 = vsub.f32 %v1585, %v1732
        %v1773 = vsub.f32 %v1589, %v1695
        %v1774 = vsub.f32 %v1591, %v1732
        %v1775 = vsub.f32 %v1595, %v1695
        %v1776 = vsub.f32 %v1597, %v1732
        %v1777 = vsub.f32 %v1601, %v1695
        %v1778 = vsub.f32 %v1603, %v1732
        %v1779 = vsub.f32 %v1607, %v1695
        %v1780 = vsub.f32 %v1609, %v1732
        %v1781 = vsub.f32 %v1613, %v1695
        %v1782 = vsub.f32 %v1615, %v1732
        %v1783 = vsub.f32 %v1619, %v1695
        %v1784 = vsub.f32 %v1621, %v1732
        %v1785 = vsub.f32 %v1625, %v1695
        %v1786 = vsub.f32 %v1627, %v1732
        %v1787 = vsub.f32 %v1631, %v1695
        %v1788 = vsub.f32 %v1633, %v1732
        %v1789 = vsub.f32 %v1637, %v1695
        %v1790 = vsub.f32 %v1639, %v1732
        %v1791 = vsub.f32 %v1643, %v1695
        %v1792 = vsub.f32 %v1645, %v1732
        %v1793 = vsub.f32 %v1649, %v1695
        %v1794 = vsub.f32 %v1651, %v1732
        %v1795 = vsub.f32 %v1655, %v1695
        %v1796 = vsub.f32 %v1657, %v1732
        %v1797 = vmul.f32 %v1733, 1.442695
        %v1798 = vpow.pop %v1797
        %v1799 = vmul.f32 %v1734, 1.442695
        %v1800 = vpow.pop %v1799
        %v1801 = vmul.f32 %v1735, 1.442695
        %v1802 = vpow.pop %v1801
        %v1803 = vmul.f32 %v1736, 1.442695
        %v1804 = vpow.pop %v1803
        %v1805 = vmul.f32 %v1737, 1.442695
        %v1806 = vpow.pop %v1805
        %v1807 = vmul.f32 %v1738, 1.442695
        %v1808 = vpow.pop %v1807
        %v1809 = vmul.f32 %v1739, 1.442695
        %v1810 = vpow.pop %v1809
        %v1811 = vmul.f32 %v1740, 1.442695
        %v1812 = vpow.pop %v1811
        %v1813 = vmul.f32 %v1741, 1.442695
        %v1814 = vpow.pop %v1813
        %v1815 = vmul.f32 %v1742, 1.442695
        %v1816 = vpow.pop %v1815
        %v1817 = vmul.f32 %v1743, 1.442695
        %v1818 = vpow.pop %v1817
        %v1819 = vmul.f32 %v1744, 1.442695
        %v1820 = vpow.pop %v1819
        %v1821 = vmul.f32 %v1745, 1.442695
        %v1822 = vpow.pop %v1821
        %v1823 = vmul.f32 %v1746, 1.442695
        %v1824 = vpow.pop %v1823
        %v1825 = vmul.f32 %v1747, 1.442695
        %v1826 = vpow.pop %v1825
        %v1827 = vmul.f32 %v1748, 1.442695
        %v1828 = vpow.pop %v1827
        %v1829 = vmul.f32 %v1749, 1.442695
        %v1830 = vpow.pop %v1829
        %v1831 = vmul.f32 %v1750, 1.442695
        %v1832 = vpow.pop %v1831
        %v1833 = vmul.f32 %v1751, 1.442695
        %v1834 = vpow.pop %v1833
        %v1835 = vmul.f32 %v1752, 1.442695
        %v1836 = vpow.pop %v1835
        %v1837 = vmul.f32 %v1753, 1.442695
        %v1838 = vpow.pop %v1837
        %v1839 = vmul.f32 %v1754, 1.442695
        %v1840 = vpow.pop %v1839
        %v1841 = vmul.f32 %v1755, 1.442695
        %v1842 = vpow.pop %v1841
        %v1843 = vmul.f32 %v1756, 1.442695
        %v1844 = vpow.pop %v1843
        %v1845 = vmul.f32 %v1757, 1.442695
        %v1846 = vpow.pop %v1845
        %v1847 = vmul.f32 %v1758, 1.442695
        %v1848 = vpow.pop %v1847
        %v1849 = vmul.f32 %v1759, 1.442695
        %v1850 = vpow.pop %v1849
        %v1851 = vmul.f32 %v1760, 1.442695
        %v1852 = vpow.pop %v1851
        %v1853 = vmul.f32 %v1761, 1.442695
        %v1854 = vpow.pop %v1853
        %v1855 = vmul.f32 %v1762, 1.442695
        %v1856 = vpow.pop %v1855
        %v1857 = vmul.f32 %v1763, 1.442695
        %v1858 = vpow.pop %v1857
        %v1859 = vmul.f32 %v1764, 1.442695
        %v1860 = vpow.pop %v1859
        %v1861 = vmul.f32 %v1765, 1.442695
        %v1862 = vpow.pop %v1861
        %v1863 = vmul.f32 %v1766, 1.442695
        %v1864 = vpow.pop %v1863
        %v1865 = vmul.f32 %v1767, 1.442695
        %v1866 = vpow.pop %v1865
        %v1867 = vmul.f32 %v1768, 1.442695
        %v1868 = vpow.pop %v1867
        %v1869 = vmul.f32 %v1769, 1.442695
        %v1870 = vpow.pop %v1869
        %v1871 = vmul.f32 %v1770, 1.442695
        %v1872 = vpow.pop %v1871
        %v1873 = vmul.f32 %v1771, 1.442695
        %v1874 = vpow.pop %v1873
        %v1875 = vmul.f32 %v1772, 1.442695
        %v1876 = vpow.pop %v1875
        %v1877 = vmul.f32 %v1773, 1.442695
        %v1878 = vpow.pop %v1877
        %v1879 = vmul.f32 %v1774, 1.442695
        %v1880 = vpow.pop %v1879
        %v1881 = vmul.f32 %v1775, 1.442695
        %v1882 = vpow.pop %v1881
        %v1883 = vmul.f32 %v1776, 1.442695
        %v1884 = vpow.pop %v1883
        %v1885 = vmul.f32 %v1777, 1.442695
        %v1886 = vpow.pop %v1885
        %v1887 = vmul.f32 %v1778, 1.442695
        %v1888 = vpow.pop %v1887
        %v1889 = vmul.f32 %v1779, 1.442695
        %v1890 = vpow.pop %v1889
        %v1891 = vmul.f32 %v1780, 1.442695
        %v1892 = vpow.pop %v1891
        %v1893 = vmul.f32 %v1781, 1.442695
        %v1894 = vpow.pop %v1893
        %v1895 = vmul.f32 %v1782, 1.442695
        %v1896 = vpow.pop %v1895
        %v1897 = vmul.f32 %v1783, 1.442695
        %v1898 = vpow.pop %v1897
        %v1899 = vmul.f32 %v1784, 1.442695
        %v1900 = vpow.pop %v1899
        %v1901 = vmul.f32 %v1785, 1.442695
        %v1902 = vpow.pop %v1901
        %v1903 = vmul.f32 %v1786, 1.442695
        %v1904 = vpow.pop %v1903
        %v1905 = vmul.f32 %v1787, 1.442695
        %v1906 = vpow.pop %v1905
        %v1907 = vmul.f32 %v1788, 1.442695
        %v1908 = vpow.pop %v1907
        %v1909 = vmul.f32 %v1789, 1.442695
        %v1910 = vpow.pop %v1909
        %v1911 = vmul.f32 %v1790, 1.442695
        %v1912 = vpow.pop %v1911
        %v1913 = vmul.f32 %v1791, 1.442695
        %v1914 = vpow.pop %v1913
        %v1915 = vmul.f32 %v1792, 1.442695
        %v1916 = vpow.pop %v1915
        %v1917 = vmul.f32 %v1793, 1.442695
        %v1918 = vpow.pop %v1917
        %v1919 = vmul.f32 %v1794, 1.442695
        %v1920 = vpow.pop %v1919
        %v1921 = vmul.f32 %v1795, 1.442695
        %v1922 = vpow.pop %v1921
        %v1923 = vmul.f32 %v1796, 1.442695
        %v1924 = vpow.pop %v1923
        %1925 = vmatprep.subr.mxu0 %v1800
        %1926 = vmatpush1.msra.mxu0 %v1798
        %1927 = vmatprep.subr.mxu0 %v1804
        %1928 = vmatpush1.msra.mxu0 %v1802
        %1929 = vmatprep.subr.mxu0 %v1808
        %1930 = vmatpush1.msra.mxu0 %v1806
        %1931 = vmatprep.subr.mxu0 %v1812
        %1932 = vmatpush1.msra.mxu0 %v1810
        %1933 = vmatprep.subr.mxu0 %v1816
        %1934 = vmatpush1.msra.mxu0 %v1814
        %1935 = vmatprep.subr.mxu0 %v1820
        %1936 = vmatpush1.msra.mxu0 %v1818
        %1937 = vmatprep.subr.mxu0 %v1824
        %1938 = vmatpush1.msra.mxu0 %v1822
        %1939 = vmatprep.subr.mxu0 %v1828
        %1940 = vmatpush1.msra.mxu0 %v1826
        %1941 = vmatprep.subr.mxu0 %v1832
        %1942 = vmatpush1.msra.mxu0 %v1830
        %1943 = vmatprep.subr.mxu0 %v1836
        %1944 = vmatpush1.msra.mxu0 %v1834
        %1945 = vmatprep.subr.mxu0 %v1840
        %1946 = vmatpush1.msra.mxu0 %v1838
        %1947 = vmatprep.subr.mxu0 %v1844
        %1948 = vmatpush1.msra.mxu0 %v1842
        %1949 = vmatprep.subr.mxu0 %v1848
        %1950 = vmatpush1.msra.mxu0 %v1846
        %1951 = vmatprep.subr.mxu0 %v1852
        %1952 = vmatpush1.msra.mxu0 %v1850
        %1953 = vmatprep.subr.mxu0 %v1856
        %1954 = vmatpush1.msra.mxu0 %v1854
        %1955 = vmatprep.subr.mxu0 %v1860
        %1956 = vmatpush1.msra.mxu0 %v1858
        %1957 = vmatprep.subr.mxu0 %v1864
        %1958 = vmatpush1.msra.mxu0 %v1862
        %1959 = vmatprep.subr.mxu0 %v1868
        %1960 = vmatpush1.msra.mxu0 %v1866
        %1961 = vmatprep.subr.mxu0 %v1872
        %1962 = vmatpush1.msra.mxu0 %v1870
        %1963 = vmatprep.subr.mxu0 %v1876
        %1964 = vmatpush1.msra.mxu0 %v1874
        %1965 = vmatprep.subr.mxu0 %v1880
        %1966 = vmatpush1.msra.mxu0 %v1878
        %1967 = vmatprep.subr.mxu0 %v1884
        %1968 = vmatpush1.msra.mxu0 %v1882
        %1969 = vmatprep.subr.mxu0 %v1888
        %1970 = vmatpush1.msra.mxu0 %v1886
        %1971 = vmatprep.subr.mxu0 %v1892
        %1972 = vmatpush1.msra.mxu0 %v1890
        %1973 = vmatprep.subr.mxu0 %v1896
        %1974 = vmatpush1.msra.mxu0 %v1894
        %1975 = vmatprep.subr.mxu0 %v1900
        %1976 = vmatpush1.msra.mxu0 %v1898
        %1977 = vmatprep.subr.mxu0 %v1904
        %1978 = vmatpush1.msra.mxu0 %v1902
        %1979 = vmatprep.subr.mxu0 %v1908
        %1980 = vmatpush1.msra.mxu0 %v1906
        %1981 = vmatprep.subr.mxu0 %v1912
        %1982 = vmatpush1.msra.mxu0 %v1910
        %1983 = vmatprep.subr.mxu0 %v1916
        %1984 = vmatpush1.msra.mxu0 %v1914
        %1985 = vmatprep.subr.mxu0 %v1920
        %1986 = vmatpush1.msra.mxu0 %v1918
        %1987 = vmatprep.subr.mxu0 %v1924
        %1988 = vmatpush1.msra.mxu0 %v1922
        %1989 = vmatprep.mubr.f32.mxu0 %v1216
        %1990 = vmatmul.mubr.f32.gmra.mrb[0].mxu0 %v1214
        %v1991 = vpop.f32.mrb[0].mxu0
        %v1992 = vadd.f32 0.0, %v1991
        %v1993 = vpop.f32.mrb[0].mxu0
        %v1994 = vadd.f32 0.0, %v1993
        %1995 = vmatprep.mubr.f32.mxu0 %v1222
        %1996 = vmatmul.mubr.f32.gmra.mrb[0].mxu0 %v1220
        %v1997 = vpop.f32.mrb[0].mxu0
        %v1998 = vadd.f32 0.0, %v1997
        %v1999 = vpop.f32.mrb[0].mxu0
        %v2000 = vadd.f32 0.0, %v1999
        %2001 = vmatprep.mubr.f32.mxu0 %v1228
        %2002 = vmatmul.mubr.f32.gmra.mrb[0].mxu0 %v1226
        %v2003 = vpop.f32.mrb[0].mxu0
        %v2004 = vadd.f32 0.0, %v2003
        %v2005 = vpop.f32.mrb[0].mxu0
        %v2006 = vadd.f32 0.0, %v2005
        %2007 = vmatprep.mubr.f32.mxu0 %v1234
        %2008 = vmatmul.mubr.f32.gmra.mrb[0].mxu0 %v1232
        %v2009 = vpop.f32.mrb[0].mxu0
        %v2010 = vadd.f32 0.0, %v2009
        %v2011 = vpop.f32.mrb[0].mxu0
        %v2012 = vadd.f32 0.0, %v2011
        %2013 = vmatprep.mubr.f32.mxu0 %v1240
        %2014 = vmatmul.mubr.f32.gmra.mrb[0].mxu0 %v1238
        %v2015 = vpop.f32.mrb[0].mxu0
        %v2016 = vadd.f32 0.0, %v2015
        %v2017 = vpop.f32.mrb[0].mxu0
        %v2018 = vadd.f32 0.0, %v2017
        %2019 = vdwg.mxu0
        %v2020 = vrcp.pop %v2016
        %v2021 = vrcp.pop %v2018
        %v2022 = vlaneseq
        %v2023 = vshrl.u32 %v2022, 7
        %v2024 = vsub.s32 0, %v2023
        %v2025 = vrot.slane %v2020, %v2024
        %v2026 = vlaneseq
        %v2027 = vshrl.u32 %v2026, 7
        %v2028 = vsub.s32 0, %v2027
        %v2029 = vrot.slane %v2021, %v2028
        %v2030 = vmul.f32 %v1992, %v2025
        %v2031 = vmul.f32 %v1994, %v2029
        %v2032 = vmul.f32 %v1998, %v2025
        %v2033 = vmul.f32 %v2000, %v2029
        %v2034 = vmul.f32 %v2004, %v2025
        %v2035 = vmul.f32 %v2006, %v2029
        %v2036 = vmul.f32 %v2010, %v2025
        %v2037 = vmul.f32 %v2012, %v2029
        %v2038 = vadd.f32 %v2030, %v1125
        %v2039 = vadd.f32 %v2031, %v1126
        %v2040 = vadd.f32 %v2032, %v1127
        %v2041 = vadd.f32 %v2033, %v1128
        %v2042 = vadd.f32 %v2034, %v1129
        %v2043 = vadd.f32 %v2035, %v1130
        %v2044 = vadd.f32 %v2036, %v1131
        %v2045 = vadd.f32 %v2037, %v1132
        %s2046 = scalar_lea.vmem %s162, 64 [#allocation5]
        %2047 = vst [vmem:[%s2046] sm:$0xff] %v2038
        %2048 = vst [vmem:[%s2046 + $0x8] sm:$0xff] %v2039
        %2049 = vst [vmem:[%s2046 + $0x10] sm:$0xff] %v2040
        %2050 = vst [vmem:[%s2046 + $0x18] sm:$0xff] %v2041
        %2051 = vst [vmem:[%s2046 + $0x20] sm:$0xff] %v2042
        %2052 = vst [vmem:[%s2046 + $0x28] sm:$0xff] %v2043
        %2053 = vst [vmem:[%s2046 + $0x30] sm:$0xff] %v2044
        %2054 = vst [vmem:[%s2046 + $0x38] sm:$0xff] %v2045
        %s2055 = sand.u32 %s74, 1
        %s2056 = scalar_lea.sflag [#allocation4], %s2055
        %s2057 = sand.u32 %s74, 1
        %s2058 = smul.addr %s2057, 128
        %s2059 = scalar_lea.vmem [#allocation5], %s2058
        // Predicated region
        $region33: #{tpu_custom_call.1} parent=27 // pred_check
          %p2060 = pneg %p84
        $region34: #{tpu_custom_call.1} parent=27 // pred_check_branch
          %2062 = sbr.rel (%p2060) target = $region36
        $region35: #{tpu_custom_call.1} parent=27 // pred_region
          %s2063 = smul.u32 2, %s19
          %s2065 = ssub.s32 2048, 2048
          %2066 = vsyncadd %s2056, %s2065
          %s2067 = smul.addr %s2063, 8
          %s2068 = smul.addr %s2067, 128
          %s2069 = scalar_lea.hbm %s2, %s2068
          %s2070 = sshll.u32 %s2059, 4
          %s2071 = int_to_ptr.vmem [resolvable:$true] %s2070
          %2076 = dma.vmem_to_hbm [thread:$0]  %s2071, 2048, %s2069, %s2056, 256, 256, 16
        $region36: #{tpu_custom_call.1} parent=27 // pred_fallthru
          _
      $region28: #{tpu_custom_call.1} parent=5 // pred_fallthru
        _
      %p2077 = scmp.le.s32.totalorder 2, %s14
      // Predicated region
      $region37: #{tpu_custom_call.1} parent=5 // pred_check
        %p2078 = pneg %p2077
      $region38: #{tpu_custom_call.1} parent=5 // pred_check_branch
        %2080 = sbr.rel (%p2078) target = $region40
      $region39: #{tpu_custom_call.1} parent=5 // pred_region
        %s2081 = ssub.s32 %s14, 2
        // Predicated region
        $region41: #{tpu_custom_call.1} parent=39 // pred_check
          %p2082 = pneg %p90
        $region42: #{tpu_custom_call.1} parent=39 // pred_check_branch
          %2084 = sbr.rel (%p2082) target = $region44
        $region43: #{tpu_custom_call.1} parent=39 // pred_region
          %s2085 = sand.u32 %s75, 1
          %s2086 = scalar_lea.sflag [#allocation4], %s2085
          %s2087 = sand.u32 %s75, 1
          %s2088 = smul.addr %s2087, 128
          %s2089 = scalar_lea.vmem [#allocation5], %s2088
          %2090 = dma.done %s2086, 2048
        $region44: #{tpu_custom_call.1} parent=39 // pred_fallthru
          _
      $region40: #{tpu_custom_call.1} parent=5 // pred_fallthru
        _
    $region6: #{tpu_custom_call.1} parent=1 // loop_footer
      %s18 = sadd.s32 1, %s14
    $region7: #{tpu_custom_call.1} parent=1 // loop_footer_branch
      %13 = sbr.rel target = $region3
    $region8: #{tpu_custom_call.1} parent=1 // loop_exit
      _
    %2091 = vsyncpa [#allocation3], 1
    %s2092 = scalar_lea.sflag [#allocation3], 1
    %2093 = vsyncpa %s2092, 1
    %2094 = vsyncpa [#allocation4], 1
    %s2095 = scalar_lea.sflag [#allocation4], 1
    %2096 = vsyncpa %s2095, 1

</llo_original>
